<compile_context>
chip_gen: v7x
topology: tpu7x:2x2x1
jax: 0.10.0
libtpu: 0.0.40
codegen_flags: <defaults>
</compile_context>

<pallas_src>
import jax
import jax.numpy as jnp
from jax.experimental import pallas as pl
from jax.experimental.pallas import tpu as pltpu

HIDDEN = 768  # fixed by nn.Linear(768, 1) in the module


def bertreg_kernel(cls_ref, wp_ref, bp_ref, wr_ref, br_ref, out_ref):
    # cls_ref : [b_tile, H] f32/bf16  CLS-token hidden states (BlockSpec gather)
    # wp_ref  : [H, H]      bf16      BERT pooler dense weight (in, out)
    # bp_ref  : [1, H]      f32       BERT pooler dense bias
    # wr_ref  : [1, H]      f32       regressor weight, pre-transposed
    # br_ref  : [1]         f32       regressor bias (SMEM scalar)
    # out_ref : [b_tile, 1] f32       rating
    cls_bf16 = cls_ref[...].astype(jnp.bfloat16)  # no-op if input already bf16
    pooled = jnp.tanh(
        jnp.dot(cls_bf16, wp_ref[...], preferred_element_type=jnp.float32)
        + bp_ref[...]
    )
    # N=1 matmul -> VPU elementwise multiply + lane reduce (MXU stays free).
    out_ref[...] = (
        jnp.sum(pooled * wr_ref[...], axis=-1, keepdims=True) + br_ref[0]
    )


def _pick_b_tile(B):
    """Batch tile selection.

    * big enough to amortize ~0.35 us/step grid overhead,
    * <= 1024 rows so peak VMEM (~11-12 MiB) fits v5e's 16 MiB scoped default,
    * >= 2 grid steps for non-tiny batches so v7x's second TensorCore gets work
      (the batch axis is marked "parallel").
    """
    MAX_TILE = 1024
    if B <= 16:
        # Tiny/latency regime: one full-batch block (block == full dim is legal
        # under the (8,128) rule); splitting would only add step overhead.
        return B
    if B <= 2 * MAX_TILE:
        half = -(-B // 2)                 # cdiv(B, 2)
        return ((half + 7) // 8) * 8      # round up to multiple of 8 -> 2 steps
    return MAX_TILE


def bertreg_forward(last_hidden_state, wp, bp, wr, br):
    """last_hidden_state: [B, S, H] f32 (or bf16) -> rating [B, 1] f32."""
    B, S, H = last_hidden_state.shape
    assert H == HIDDEN, H

    # Free metadata reshape (row-major [B,S,H]); CLS token occupies columns
    # [0, H) of each row, so the BlockSpec DMA fetches exactly the CLS slice.
    x_flat = last_hidden_state.reshape(B, S * H)

    wp_bf16 = wp.astype(jnp.bfloat16)              # half-size weight DMA
    bp2 = bp.reshape(1, H).astype(jnp.float32)
    wr_t = wr.reshape(1, H).astype(jnp.float32)    # pre-transposed for VPU reduce
    br1 = br.reshape(1).astype(jnp.float32)

    b_tile = _pick_b_tile(B)
    grid = (pl.cdiv(B, b_tile),)

    # Constant-index weight blocks are never re-fetched -> single-buffer them.
    resident = dict(pipeline_mode=pl.Buffered(1))

    return pl.pallas_call(
        bertreg_kernel,
        out_shape=jax.ShapeDtypeStruct((B, 1), jnp.float32),
        grid=grid,
        in_specs=[
            # CLS rows of this batch tile.
            pl.BlockSpec((b_tile, HIDDEN), lambda i: (i, 0)),
            # Weights / biases: constant block index -> VMEM-resident.
            pl.BlockSpec((HIDDEN, HIDDEN), lambda i: (0, 0), **resident),
            pl.BlockSpec((1, HIDDEN), lambda i: (0, 0), **resident),
            pl.BlockSpec((1, HIDDEN), lambda i: (0, 0), **resident),
            # Scalar regressor bias in SMEM.
            pl.BlockSpec(memory_space=pltpu.MemorySpace.SMEM),
        ],
        out_specs=pl.BlockSpec((b_tile, 1), lambda i: (i, 0)),
        compiler_params=pltpu.CompilerParams(
            dimension_semantics=("parallel",),
        ),
    )(x_flat, wp_bf16, bp2, wr_t, br1)


def reference_forward(last_hidden_state, wp, bp, wr, br):
    cls_tok = last_hidden_state[:, 0, :]
    pooled = jnp.tanh(cls_tok @ wp + bp)
    return pooled @ wr + br


if __name__ == "__main__":
    key = jax.random.PRNGKey(0)
    k_x, k_wp, k_bp, k_wr, k_br = jax.random.split(key, 5)

    S, H = 8, HIDDEN  # small seq; hidden fixed at 768 by the module

    # Deterministic parameter init (nn.Linear-style uniform +-1/sqrt(fan_in)).
    bound = 1.0 / jnp.sqrt(jnp.float32(H))
    wp = jax.random.uniform(k_wp, (H, H), jnp.float32, -bound, bound)
    bp = jax.random.uniform(k_bp, (H,), jnp.float32, -bound, bound)
    wr = jax.random.uniform(k_wr, (H, 1), jnp.float32, -bound, bound)
    br = jax.random.uniform(k_br, (1,), jnp.float32, -bound, bound)

    # 1) Tiny-batch (latency) path: single grid step.
    B = 2
    last_hidden_state = jax.random.normal(k_x, (B, S, H), dtype=jnp.float32)
    rating = jax.block_until_ready(
        bertreg_forward(last_hidden_state, wp, bp, wr, br)
    )
    ref = reference_forward(last_hidden_state, wp, bp, wr, br)
    assert rating.shape == (B, 1), rating.shape
    # bf16 pooler weights -> loosened tolerance vs. the f32 reference.
    assert jnp.allclose(rating, ref, atol=3e-2, rtol=3e-2), (rating, ref)

    # 2) Multi-step path (2 grid steps + masked tail block): exercises the
    #    "parallel" batch split that feeds both v7x TensorCores.
    B2 = 24
    lhs2 = jax.random.normal(k_x, (B2, S, H), dtype=jnp.float32)
    rating2 = jax.block_until_ready(bertreg_forward(lhs2, wp, bp, wr, br))
    ref2 = reference_forward(lhs2, wp, bp, wr, br)
    assert rating2.shape == (B2, 1), rating2.shape
    assert jnp.allclose(rating2, ref2, atol=3e-2, rtol=3e-2), (rating2, ref2)

    print("KERNEL_OK")
</pallas_src>

<mosaic_0001>
module attributes {stable_mosaic.version = 11 : i64} {
  func.func @bertreg_kernel(%arg0: i32, %arg1: memref<2x768xf32, #tpu.memory_space<vmem>>, %arg2: memref<768x768xbf16, #tpu.memory_space<vmem>>, %arg3: memref<1x768xf32, #tpu.memory_space<vmem>>, %arg4: memref<1x768xf32, #tpu.memory_space<vmem>>, %arg5: memref<1xf32, #tpu.memory_space<smem>>, %arg6: memref<2x1xf32, #tpu.memory_space<vmem>>) attributes {dimension_semantics = [#tpu.dimension_semantics<parallel>], iteration_bounds = array<i64: 1>, scalar_prefetch = 0 : i64, scratch_operands = 0 : i64, tpu.core_type = #tpu.core_type<tc>, window_params = [{transform_indices = @transform_0, window_bounds = array<i64: 2, 768>}, {pipeline_mode = #tpu.pipeline_mode<synchronous>, transform_indices = @transform_1, window_bounds = array<i64: 768, 768>}, {pipeline_mode = #tpu.pipeline_mode<synchronous>, transform_indices = @transform_2, window_bounds = array<i64: 1, 768>}, {pipeline_mode = #tpu.pipeline_mode<synchronous>, transform_indices = @transform_3, window_bounds = array<i64: 1, 768>}, {transform_indices = @transform_4, window_bounds = array<i64: 1>}, {transform_indices = @transform_5, window_bounds = array<i64: 2, 1>}]} {
    %c0 = arith.constant 0 : index
    %c0_0 = arith.constant 0 : index
    %0 = vector.load %arg1[%c0, %c0_0] : memref<2x768xf32, #tpu.memory_space<vmem>>, vector<2x768xf32>
    %1 = arith.truncf %0 : vector<2x768xf32> to vector<2x768xbf16>
    %c0_1 = arith.constant 0 : index
    %c0_2 = arith.constant 0 : index
    %2 = vector.load %arg2[%c0_1, %c0_2] : memref<768x768xbf16, #tpu.memory_space<vmem>>, vector<768x768xbf16>
    %cst = arith.constant dense<0.000000e+00> : vector<2x768xf32>
    %3 = tpu.matmul %1, %2, %cst {dimension_numbers = #tpu.dot_dimension_numbers<[1], [0], [0], [1], [0, 0, 1, 1], [], []>} : vector<2x768xbf16>, vector<768x768xbf16>, vector<2x768xf32> -> vector<2x768xf32>
    %c0_3 = arith.constant 0 : index
    %c0_4 = arith.constant 0 : index
    %4 = vector.load %arg3[%c0_3, %c0_4] : memref<1x768xf32, #tpu.memory_space<vmem>>, vector<1x768xf32>
    %5 = vector.broadcast %4 : vector<1x768xf32> to vector<2x768xf32>
    %6 = arith.addf %3, %5 : vector<2x768xf32>
    %7 = math.tanh %6 : vector<2x768xf32>
    %c0_5 = arith.constant 0 : index
    %c0_6 = arith.constant 0 : index
    %8 = vector.load %arg4[%c0_5, %c0_6] : memref<1x768xf32, #tpu.memory_space<vmem>>, vector<1x768xf32>
    %9 = vector.broadcast %8 : vector<1x768xf32> to vector<2x768xf32>
    %10 = arith.mulf %7, %9 : vector<2x768xf32>
    %cst_7 = arith.constant dense<0.000000e+00> : vector<2xf32>
    %11 = vector.multi_reduction <add>, %10, %cst_7 [1] : vector<2x768xf32> to vector<2xf32>
    %12 = vector.shape_cast %11 : vector<2xf32> to vector<2x1xf32>
    %c0_8 = arith.constant 0 : index
    %13 = memref.load %arg5[%c0_8] : memref<1xf32, #tpu.memory_space<smem>>
    %14 = vector.broadcast %13 : f32 to vector<2x1xf32>
    %15 = arith.addf %12, %14 : vector<2x1xf32>
    %c0_9 = arith.constant 0 : index
    %c0_10 = arith.constant 0 : index
    %16 = vector.load %arg6[%c0_9, %c0_10] : memref<2x1xf32, #tpu.memory_space<vmem>>, vector<2x1xf32>
    tpu.vector_store %arg6[%c0_9, %c0_10], %15 {strides = array<i32>} : memref<2x1xf32, #tpu.memory_space<vmem>>, vector<2x1xf32>,
    return
  }
  func.func @transform_0(%arg0: i32) -> (i32, i32) {
    %c0_i32 = arith.constant 0 : i32
    %c0_i32_0 = arith.constant 0 : i32
    return %arg0, %c0_i32 : i32, i32
  }
  func.func @transform_1(%arg0: i32) -> (i32, i32) {
    %c0_i32 = arith.constant 0 : i32
    %c0_i32_0 = arith.constant 0 : i32
    %c0_i32_1 = arith.constant 0 : i32
    return %c0_i32, %c0_i32_0 : i32, i32
  }
  func.func @transform_2(%arg0: i32) -> (i32, i32) {
    %c0_i32 = arith.constant 0 : i32
    %c0_i32_0 = arith.constant 0 : i32
    %c0_i32_1 = arith.constant 0 : i32
    return %c0_i32, %c0_i32_0 : i32, i32
  }
  func.func @transform_3(%arg0: i32) -> (i32, i32) {
    %c0_i32 = arith.constant 0 : i32
    %c0_i32_0 = arith.constant 0 : i32
    %c0_i32_1 = arith.constant 0 : i32
    return %c0_i32, %c0_i32_0 : i32, i32
  }
  func.func @transform_4(%arg0: i32) -> i32 {
    %c0_i32 = arith.constant 0 : i32
    %c0_i32_0 = arith.constant 0 : i32
    return %c0_i32 : i32
  }
  func.func @transform_5(%arg0: i32) -> (i32, i32) {
    %c0_i32 = arith.constant 0 : i32
    %c0_i32_0 = arith.constant 0 : i32
    return %arg0, %c0_i32 : i32, i32
  }
}

</mosaic_0001>

<llo_original>
// kernel: tpu_custom_call.1
$region0: #{tpu_custom_call.1}
  #allocation0 [shape = 'u32[]', space=smem, size = 0x4, offset = 0x4, fixed_abs, tag = 'smem constant byte address 0x4 - core index']
  #allocation1 [shape = 'u32[144,128]{1,0:T(1,128)}', space=vmem, size = 0x12000, scoped, tag = 'internal scratch']
  #allocation2 [shape = 'f32[1]{0:T(128)S(6)}', space=smem, size = 0x200, scoped, tag = 'scoped memory for tpu_custom_call.1']
  %s0 = inlined_call_operand.hbm [shape: f32[2,6144], index: 0, kind: input, shape index: {}]
  %s1 = inlined_call_operand.hbm [shape: bf16[768,768], index: 1, kind: input, shape index: {}]
  %s2 = inlined_call_operand.hbm [shape: f32[1,768], index: 2, kind: input, shape index: {}]
  %s3 = inlined_call_operand.hbm [shape: f32[1,768], index: 3, kind: input, shape index: {}]
  %s4 = inlined_call_operand.<no memory space> [shape: f32[1], index: 4, kind: input, shape index: {}]
  %s5 = inlined_call_operand.vmem [shape: f32[2,1], index: 5, kind: output, shape index: {}]
  %s6 = sld [smem:[#allocation0]]
  $region46: #{tpu_custom_call.1} parent=0
    _
  %s8 = ssub.s32 1, %s6
  %s9 = scalar_select 0, %s8, %s6
  %10 = sst [smem:[#allocation2]] %s4
  $region1: #{tpu_custom_call.1} parent=0
    #allocation3 [shape = 'u8[6144]{0}', space=vmem, size = 0x1800, scoped, tag = 'input window, operand 0, single buffered']
    #allocation4 [shape = 's32[1]{0}', space=sflag, size = 0x4, scoped, tag = 'scoped memory for tpu_custom_call.1']
    #allocation5 [shape = 'u8[1179648]{0}', space=vmem, size = 0x120000, scoped, tag = 'input window, operand 1, single buffered']
    #allocation6 [shape = 's32[1]{0}', space=sflag, size = 0x4, scoped, tag = 'scoped memory for tpu_custom_call.1']
    #allocation7 [shape = 'u8[3072]{0}', space=vmem, size = 0xc00, scoped, tag = 'input window, operand 2, single buffered']
    #allocation8 [shape = 'u8[3072]{0}', space=vmem, size = 0xc00, scoped, tag = 'input window, operand 3, single buffered']
    #allocation9 [shape = 's32[1]{0}', space=sflag, size = 0x4, scoped, tag = 'scoped memory for tpu_custom_call.1']
    %11 = vsyncpa [#allocation4], 0
    %12 = vsyncpa [#allocation6], 0
    %13 = vsyncpa [#allocation9], 0
    // Predicated region
    $region2: #{tpu_custom_call.1} parent=1 // pred_check
      _
    $region3: #{tpu_custom_call.1} parent=1 // pred_check_branch
      %15 = sbr.rel (0) target = $region5
    $region4: #{tpu_custom_call.1} parent=1 // pred_region
      %s17 = ssub.s32 192, 192
      %18 = vsyncadd [#allocation4], %s17
      %s20 = sshll.u32 [#allocation3], 4
      %s21 = int_to_ptr.vmem [resolvable:$true] %s20
      %23 = dma.hbm_to_vmem [thread:$0]  %s0, 192, %s21, [#allocation4]
    $region5: #{tpu_custom_call.1} parent=1 // pred_fallthru
      _
    // Predicated region
    $region6: #{tpu_custom_call.1} parent=1 // pred_check
      _
    $region7: #{tpu_custom_call.1} parent=1 // pred_check_branch
      %25 = sbr.rel (0) target = $region9
    $region8: #{tpu_custom_call.1} parent=1 // pred_region
      %s27 = ssub.s32 36864, 36864
      %28 = vsyncadd [#allocation6], %s27
      %s29 = sshll.u32 [#allocation5], 4
      %s30 = int_to_ptr.vmem [resolvable:$true] %s29
      %35 = dma.hbm_to_vmem [thread:$0]  %s1, 36864, %s30, [#allocation6], 384, 384, 24
    $region9: #{tpu_custom_call.1} parent=1 // pred_fallthru
      _
    // Predicated region
    $region10: #{tpu_custom_call.1} parent=1 // pred_check
      _
    $region11: #{tpu_custom_call.1} parent=1 // pred_check_branch
      %37 = sbr.rel (0) target = $region13
    $region12: #{tpu_custom_call.1} parent=1 // pred_region
      %s39 = ssub.s32 96, 96
      %40 = vsyncadd [#allocation6], %s39
      %s42 = sshll.u32 [#allocation7], 4
      %s43 = int_to_ptr.vmem [resolvable:$true] %s42
      %45 = dma.hbm_to_vmem [thread:$0]  %s2, 96, %s43, [#allocation6]
    $region13: #{tpu_custom_call.1} parent=1 // pred_fallthru
      _
    // Predicated region
    $region14: #{tpu_custom_call.1} parent=1 // pred_check
      _
    $region15: #{tpu_custom_call.1} parent=1 // pred_check_branch
      %47 = sbr.rel (0) target = $region17
    $region16: #{tpu_custom_call.1} parent=1 // pred_region
      %s49 = ssub.s32 96, 96
      %50 = vsyncadd [#allocation9], %s49
      %s52 = sshll.u32 [#allocation8], 4
      %s53 = int_to_ptr.vmem [resolvable:$true] %s52
      %55 = dma.hbm_to_vmem [thread:$0]  %s3, 96, %s53, [#allocation9]
    $region17: #{tpu_custom_call.1} parent=1 // pred_fallthru
      _
    // Predicated region
    $region18: #{tpu_custom_call.1} parent=1 // pred_check
      _
    $region19: #{tpu_custom_call.1} parent=1 // pred_check_branch
      %57 = sbr.rel (0) target = $region21
    $region20: #{tpu_custom_call.1} parent=1 // pred_region
      _
    $region21: #{tpu_custom_call.1} parent=1 // pred_fallthru
      _
    // Predicated region
    $region22: #{tpu_custom_call.1} parent=1 // pred_check
      _
    $region23: #{tpu_custom_call.1} parent=1 // pred_check_branch
      %59 = sbr.rel (0) target = $region25
    $region24: #{tpu_custom_call.1} parent=1 // pred_region
      %60 = dma.done [#allocation4], 192
    $region25: #{tpu_custom_call.1} parent=1 // pred_fallthru
      _
    // Predicated region
    $region26: #{tpu_custom_call.1} parent=1 // pred_check
      _
    $region27: #{tpu_custom_call.1} parent=1 // pred_check_branch
      %62 = sbr.rel (0) target = $region29
    $region28: #{tpu_custom_call.1} parent=1 // pred_region
      %63 = dma.done [#allocation6], 36864
    $region29: #{tpu_custom_call.1} parent=1 // pred_fallthru
      _
    // Predicated region
    $region30: #{tpu_custom_call.1} parent=1 // pred_check
      _
    $region31: #{tpu_custom_call.1} parent=1 // pred_check_branch
      %65 = sbr.rel (0) target = $region33
    $region32: #{tpu_custom_call.1} parent=1 // pred_region
      %66 = dma.done [#allocation6], 96
    $region33: #{tpu_custom_call.1} parent=1 // pred_fallthru
      _
    // Predicated region
    $region34: #{tpu_custom_call.1} parent=1 // pred_check
      _
    $region35: #{tpu_custom_call.1} parent=1 // pred_check_branch
      %68 = sbr.rel (0) target = $region37
    $region36: #{tpu_custom_call.1} parent=1 // pred_region
      %69 = dma.done [#allocation9], 96
    $region37: #{tpu_custom_call.1} parent=1 // pred_fallthru
      _
    %v70 = vld [vmem:[#allocation3] sm:$0xff]
    %v71 = vld [vmem:[#allocation3 + $0x8] sm:$0xf]
    %v74 = vcombine.high %v70, %v70
    %v76 = vunpack.c.l.s4 1983009808
    %v77 = vunpack.c.0.s8 %v76
    %v78 = vlaneseq
    %v79 = vshrl.u32 %v78, 7
    %v80 = vsub.s32 %v77, %v79
    %v81 = vrot.slane %v70, %v80
    %v83 = vunpack.c.l.s4 1983009808
    %v84 = vunpack.c.0.s8 %v83
    %v85 = vlaneseq
    %v86 = vshrl.u32 %v85, 7
    %v87 = vsub.s32 %v84, %v86
    %v88 = vrot.slane %v74, %v87
    %v89 = vcombine.high %v81, %v81
    %v90 = vcombine.high %v88, %v88
    %v92 = vunpack.c.l.s4 1983009808
    %v93 = vunpack.c.0.s8 %v92
    %v94 = vlaneseq
    %v95 = vshrl.u32 %v94, 7
    %v96 = vsub.s32 %v93, %v95
    %v97 = vrot.slane %v71, %v96
    %v98 = vcombine.high %v97, %v97
    %v105 = vpack.c.bf16 %v81, %v81
    %v106 = vpack.c.bf16 %v89, %v89
    %v107 = vpack.c.bf16 %v88, %v88
    %v108 = vpack.c.bf16 %v90, %v90
    %v109 = vpack.c.bf16 %v97, %v97
    %v110 = vpack.c.bf16 %v98, %v98
    %v111 = vld [vmem:[#allocation5] sm:$0xff]
    %v112 = vld [vmem:[#allocation5 + $0x8] sm:$0xff]
    %v113 = vld [vmem:[#allocation5 + $0x10] sm:$0xff]
    %v114 = vld [vmem:[#allocation5 + $0x18] sm:$0xff]
    %v115 = vld [vmem:[#allocation5 + $0x20] sm:$0xff]
    %v116 = vld [vmem:[#allocation5 + $0x28] sm:$0xff]
    %v117 = vld [vmem:[#allocation5 + $0x30] sm:$0xff]
    %v118 = vld [vmem:[#allocation5 + $0x38] sm:$0xff]
    %v119 = vld [vmem:[#allocation5 + $0x40] sm:$0xff]
    %v120 = vld [vmem:[#allocation5 + $0x48] sm:$0xff]
    %v121 = vld [vmem:[#allocation5 + $0x50] sm:$0xff]
    %v122 = vld [vmem:[#allocation5 + $0x58] sm:$0xff]
    %v123 = vld [vmem:[#allocation5 + $0x60] sm:$0xff]
    %v124 = vld [vmem:[#allocation5 + $0x68] sm:$0xff]
    %v125 = vld [vmem:[#allocation5 + $0x70] sm:$0xff]
    %v126 = vld [vmem:[#allocation5 + $0x78] sm:$0xff]
    %v127 = vld [vmem:[#allocation5 + $0x80] sm:$0xff]
    %v128 = vld [vmem:[#allocation5 + $0x88] sm:$0xff]
    %v129 = vld [vmem:[#allocation5 + $0x90] sm:$0xff]
    %v130 = vld [vmem:[#allocation5 + $0x98] sm:$0xff]
    %v131 = vld [vmem:[#allocation5 + $0xa0] sm:$0xff]
    %v132 = vld [vmem:[#allocation5 + $0xa8] sm:$0xff]
    %v133 = vld [vmem:[#allocation5 + $0xb0] sm:$0xff]
    %v134 = vld [vmem:[#allocation5 + $0xb8] sm:$0xff]
    %v135 = vld [vmem:[#allocation5 + $0xc0] sm:$0xff]
    %v136 = vld [vmem:[#allocation5 + $0xc8] sm:$0xff]
    %v137 = vld [vmem:[#allocation5 + $0xd0] sm:$0xff]
    %v138 = vld [vmem:[#allocation5 + $0xd8] sm:$0xff]
    %v139 = vld [vmem:[#allocation5 + $0xe0] sm:$0xff]
    %v140 = vld [vmem:[#allocation5 + $0xe8] sm:$0xff]
    %v141 = vld [vmem:[#allocation5 + $0xf0] sm:$0xff]
    %v142 = vld [vmem:[#allocation5 + $0xf8] sm:$0xff]
    %v143 = vld [vmem:[#allocation5 + $0x100] sm:$0xff]
    %v144 = vld [vmem:[#allocation5 + $0x108] sm:$0xff]
    %v145 = vld [vmem:[#allocation5 + $0x110] sm:$0xff]
    %v146 = vld [vmem:[#allocation5 + $0x118] sm:$0xff]
    %v147 = vld [vmem:[#allocation5 + $0x120] sm:$0xff]
    %v148 = vld [vmem:[#allocation5 + $0x128] sm:$0xff]
    %v149 = vld [vmem:[#allocation5 + $0x130] sm:$0xff]
    %v150 = vld [vmem:[#allocation5 + $0x138] sm:$0xff]
    %v151 = vld [vmem:[#allocation5 + $0x140] sm:$0xff]
    %v152 = vld [vmem:[#allocation5 + $0x148] sm:$0xff]
    %v153 = vld [vmem:[#allocation5 + $0x150] sm:$0xff]
    %v154 = vld [vmem:[#allocation5 + $0x158] sm:$0xff]
    %v155 = vld [vmem:[#allocation5 + $0x160] sm:$0xff]
    %v156 = vld [vmem:[#allocation5 + $0x168] sm:$0xff]
    %v157 = vld [vmem:[#allocation5 + $0x170] sm:$0xff]
    %v158 = vld [vmem:[#allocation5 + $0x178] sm:$0xff]
    %v159 = vld [vmem:[#allocation5 + $0x180] sm:$0xff]
    %v160 = vld [vmem:[#allocation5 + $0x188] sm:$0xff]
    %v161 = vld [vmem:[#allocation5 + $0x190] sm:$0xff]
    %v162 = vld [vmem:[#allocation5 + $0x198] sm:$0xff]
    %v163 = vld [vmem:[#allocation5 + $0x1a0] sm:$0xff]
    %v164 = vld [vmem:[#allocation5 + $0x1a8] sm:$0xff]
    %v165 = vld [vmem:[#allocation5 + $0x1b0] sm:$0xff]
    %v166 = vld [vmem:[#allocation5 + $0x1b8] sm:$0xff]
    %v167 = vld [vmem:[#allocation5 + $0x1c0] sm:$0xff]
    %v168 = vld [vmem:[#allocation5 + $0x1c8] sm:$0xff]
    %v169 = vld [vmem:[#allocation5 + $0x1d0] sm:$0xff]
    %v170 = vld [vmem:[#allocation5 + $0x1d8] sm:$0xff]
    %v171 = vld [vmem:[#allocation5 + $0x1e0] sm:$0xff]
    %v172 = vld [vmem:[#allocation5 + $0x1e8] sm:$0xff]
    %v173 = vld [vmem:[#allocation5 + $0x1f0] sm:$0xff]
    %v174 = vld [vmem:[#allocation5 + $0x1f8] sm:$0xff]
    %v175 = vld [vmem:[#allocation5 + $0x200] sm:$0xff]
    %v176 = vld [vmem:[#allocation5 + $0x208] sm:$0xff]
    %v177 = vld [vmem:[#allocation5 + $0x210] sm:$0xff]
    %v178 = vld [vmem:[#allocation5 + $0x218] sm:$0xff]
    %v179 = vld [vmem:[#allocation5 + $0x220] sm:$0xff]
    %v180 = vld [vmem:[#allocation5 + $0x228] sm:$0xff]
    %v181 = vld [vmem:[#allocation5 + $0x230] sm:$0xff]
    %v182 = vld [vmem:[#allocation5 + $0x238] sm:$0xff]
    %v183 = vld [vmem:[#allocation5 + $0x240] sm:$0xff]
    %v184 = vld [vmem:[#allocation5 + $0x248] sm:$0xff]
    %v185 = vld [vmem:[#allocation5 + $0x250] sm:$0xff]
    %v186 = vld [vmem:[#allocation5 + $0x258] sm:$0xff]
    %v187 = vld [vmem:[#allocation5 + $0x260] sm:$0xff]
    %v188 = vld [vmem:[#allocation5 + $0x268] sm:$0xff]
    %v189 = vld [vmem:[#allocation5 + $0x270] sm:$0xff]
    %v190 = vld [vmem:[#allocation5 + $0x278] sm:$0xff]
    %v191 = vld [vmem:[#allocation5 + $0x280] sm:$0xff]
    %v192 = vld [vmem:[#allocation5 + $0x288] sm:$0xff]
    %v193 = vld [vmem:[#allocation5 + $0x290] sm:$0xff]
    %v194 = vld [vmem:[#allocation5 + $0x298] sm:$0xff]
    %v195 = vld [vmem:[#allocation5 + $0x2a0] sm:$0xff]
    %v196 = vld [vmem:[#allocation5 + $0x2a8] sm:$0xff]
    %v197 = vld [vmem:[#allocation5 + $0x2b0] sm:$0xff]
    %v198 = vld [vmem:[#allocation5 + $0x2b8] sm:$0xff]
    %v199 = vld [vmem:[#allocation5 + $0x2c0] sm:$0xff]
    %v200 = vld [vmem:[#allocation5 + $0x2c8] sm:$0xff]
    %v201 = vld [vmem:[#allocation5 + $0x2d0] sm:$0xff]
    %v202 = vld [vmem:[#allocation5 + $0x2d8] sm:$0xff]
    %v203 = vld [vmem:[#allocation5 + $0x2e0] sm:$0xff]
    %v204 = vld [vmem:[#allocation5 + $0x2e8] sm:$0xff]
    %v205 = vld [vmem:[#allocation5 + $0x2f0] sm:$0xff]
    %v206 = vld [vmem:[#allocation5 + $0x2f8] sm:$0xff]
    %v207 = vld [vmem:[#allocation5 + $0x300] sm:$0xff]
    %v208 = vld [vmem:[#allocation5 + $0x308] sm:$0xff]
    %v209 = vld [vmem:[#allocation5 + $0x310] sm:$0xff]
    %v210 = vld [vmem:[#allocation5 + $0x318] sm:$0xff]
    %v211 = vld [vmem:[#allocation5 + $0x320] sm:$0xff]
    %v212 = vld [vmem:[#allocation5 + $0x328] sm:$0xff]
    %v213 = vld [vmem:[#allocation5 + $0x330] sm:$0xff]
    %v214 = vld [vmem:[#allocation5 + $0x338] sm:$0xff]
    %v215 = vld [vmem:[#allocation5 + $0x340] sm:$0xff]
    %v216 = vld [vmem:[#allocation5 + $0x348] sm:$0xff]
    %v217 = vld [vmem:[#allocation5 + $0x350] sm:$0xff]
    %v218 = vld [vmem:[#allocation5 + $0x358] sm:$0xff]
    %v219 = vld [vmem:[#allocation5 + $0x360] sm:$0xff]
    %v220 = vld [vmem:[#allocation5 + $0x368] sm:$0xff]
    %v221 = vld [vmem:[#allocation5 + $0x370] sm:$0xff]
    %v222 = vld [vmem:[#allocation5 + $0x378] sm:$0xff]
    %v223 = vld [vmem:[#allocation5 + $0x380] sm:$0xff]
    %v224 = vld [vmem:[#allocation5 + $0x388] sm:$0xff]
    %v225 = vld [vmem:[#allocation5 + $0x390] sm:$0xff]
    %v226 = vld [vmem:[#allocation5 + $0x398] sm:$0xff]
    %v227 = vld [vmem:[#allocation5 + $0x3a0] sm:$0xff]
    %v228 = vld [vmem:[#allocation5 + $0x3a8] sm:$0xff]
    %v229 = vld [vmem:[#allocation5 + $0x3b0] sm:$0xff]
    %v230 = vld [vmem:[#allocation5 + $0x3b8] sm:$0xff]
    %v231 = vld [vmem:[#allocation5 + $0x3c0] sm:$0xff]
    %v232 = vld [vmem:[#allocation5 + $0x3c8] sm:$0xff]
    %v233 = vld [vmem:[#allocation5 + $0x3d0] sm:$0xff]
    %v234 = vld [vmem:[#allocation5 + $0x3d8] sm:$0xff]
    %v235 = vld [vmem:[#allocation5 + $0x3e0] sm:$0xff]
    %v236 = vld [vmem:[#allocation5 + $0x3e8] sm:$0xff]
    %v237 = vld [vmem:[#allocation5 + $0x3f0] sm:$0xff]
    %v238 = vld [vmem:[#allocation5 + $0x3f8] sm:$0xff]
    %v239 = vld [vmem:[#allocation5 + $0x400] sm:$0xff]
    %v240 = vld [vmem:[#allocation5 + $0x408] sm:$0xff]
    %v241 = vld [vmem:[#allocation5 + $0x410] sm:$0xff]
    %v242 = vld [vmem:[#allocation5 + $0x418] sm:$0xff]
    %v243 = vld [vmem:[#allocation5 + $0x420] sm:$0xff]
    %v244 = vld [vmem:[#allocation5 + $0x428] sm:$0xff]
    %v245 = vld [vmem:[#allocation5 + $0x430] sm:$0xff]
    %v246 = vld [vmem:[#allocation5 + $0x438] sm:$0xff]
    %v247 = vld [vmem:[#allocation5 + $0x440] sm:$0xff]
    %v248 = vld [vmem:[#allocation5 + $0x448] sm:$0xff]
    %v249 = vld [vmem:[#allocation5 + $0x450] sm:$0xff]
    %v250 = vld [vmem:[#allocation5 + $0x458] sm:$0xff]
    %v251 = vld [vmem:[#allocation5 + $0x460] sm:$0xff]
    %v252 = vld [vmem:[#allocation5 + $0x468] sm:$0xff]
    %v253 = vld [vmem:[#allocation5 + $0x470] sm:$0xff]
    %v254 = vld [vmem:[#allocation5 + $0x478] sm:$0xff]
    %v255 = vld [vmem:[#allocation5 + $0x480] sm:$0xff]
    %v256 = vld [vmem:[#allocation5 + $0x488] sm:$0xff]
    %v257 = vld [vmem:[#allocation5 + $0x490] sm:$0xff]
    %v258 = vld [vmem:[#allocation5 + $0x498] sm:$0xff]
    %v259 = vld [vmem:[#allocation5 + $0x4a0] sm:$0xff]
    %v260 = vld [vmem:[#allocation5 + $0x4a8] sm:$0xff]
    %v261 = vld [vmem:[#allocation5 + $0x4b0] sm:$0xff]
    %v262 = vld [vmem:[#allocation5 + $0x4b8] sm:$0xff]
    %v263 = vld [vmem:[#allocation5 + $0x4c0] sm:$0xff]
    %v264 = vld [vmem:[#allocation5 + $0x4c8] sm:$0xff]
    %v265 = vld [vmem:[#allocation5 + $0x4d0] sm:$0xff]
    %v266 = vld [vmem:[#allocation5 + $0x4d8] sm:$0xff]
    %v267 = vld [vmem:[#allocation5 + $0x4e0] sm:$0xff]
    %v268 = vld [vmem:[#allocation5 + $0x4e8] sm:$0xff]
    %v269 = vld [vmem:[#allocation5 + $0x4f0] sm:$0xff]
    %v270 = vld [vmem:[#allocation5 + $0x4f8] sm:$0xff]
    %v271 = vld [vmem:[#allocation5 + $0x500] sm:$0xff]
    %v272 = vld [vmem:[#allocation5 + $0x508] sm:$0xff]
    %v273 = vld [vmem:[#allocation5 + $0x510] sm:$0xff]
    %v274 = vld [vmem:[#allocation5 + $0x518] sm:$0xff]
    %v275 = vld [vmem:[#allocation5 + $0x520] sm:$0xff]
    %v276 = vld [vmem:[#allocation5 + $0x528] sm:$0xff]
    %v277 = vld [vmem:[#allocation5 + $0x530] sm:$0xff]
    %v278 = vld [vmem:[#allocation5 + $0x538] sm:$0xff]
    %v279 = vld [vmem:[#allocation5 + $0x540] sm:$0xff]
    %v280 = vld [vmem:[#allocation5 + $0x548] sm:$0xff]
    %v281 = vld [vmem:[#allocation5 + $0x550] sm:$0xff]
    %v282 = vld [vmem:[#allocation5 + $0x558] sm:$0xff]
    %v283 = vld [vmem:[#allocation5 + $0x560] sm:$0xff]
    %v284 = vld [vmem:[#allocation5 + $0x568] sm:$0xff]
    %v285 = vld [vmem:[#allocation5 + $0x570] sm:$0xff]
    %v286 = vld [vmem:[#allocation5 + $0x578] sm:$0xff]
    %v287 = vld [vmem:[#allocation5 + $0x580] sm:$0xff]
    %v288 = vld [vmem:[#allocation5 + $0x588] sm:$0xff]
    %v289 = vld [vmem:[#allocation5 + $0x590] sm:$0xff]
    %v290 = vld [vmem:[#allocation5 + $0x598] sm:$0xff]
    %v291 = vld [vmem:[#allocation5 + $0x5a0] sm:$0xff]
    %v292 = vld [vmem:[#allocation5 + $0x5a8] sm:$0xff]
    %v293 = vld [vmem:[#allocation5 + $0x5b0] sm:$0xff]
    %v294 = vld [vmem:[#allocation5 + $0x5b8] sm:$0xff]
    %v295 = vld [vmem:[#allocation5 + $0x5c0] sm:$0xff]
    %v296 = vld [vmem:[#allocation5 + $0x5c8] sm:$0xff]
    %v297 = vld [vmem:[#allocation5 + $0x5d0] sm:$0xff]
    %v298 = vld [vmem:[#allocation5 + $0x5d8] sm:$0xff]
    %v299 = vld [vmem:[#allocation5 + $0x5e0] sm:$0xff]
    %v300 = vld [vmem:[#allocation5 + $0x5e8] sm:$0xff]
    %v301 = vld [vmem:[#allocation5 + $0x5f0] sm:$0xff]
    %v302 = vld [vmem:[#allocation5 + $0x5f8] sm:$0xff]
    %v303 = vld [vmem:[#allocation5 + $0x600] sm:$0xff]
    %v304 = vld [vmem:[#allocation5 + $0x608] sm:$0xff]
    %v305 = vld [vmem:[#allocation5 + $0x610] sm:$0xff]
    %v306 = vld [vmem:[#allocation5 + $0x618] sm:$0xff]
    %v307 = vld [vmem:[#allocation5 + $0x620] sm:$0xff]
    %v308 = vld [vmem:[#allocation5 + $0x628] sm:$0xff]
    %v309 = vld [vmem:[#allocation5 + $0x630] sm:$0xff]
    %v310 = vld [vmem:[#allocation5 + $0x638] sm:$0xff]
    %v311 = vld [vmem:[#allocation5 + $0x640] sm:$0xff]
    %v312 = vld [vmem:[#allocation5 + $0x648] sm:$0xff]
    %v313 = vld [vmem:[#allocation5 + $0x650] sm:$0xff]
    %v314 = vld [vmem:[#allocation5 + $0x658] sm:$0xff]
    %v315 = vld [vmem:[#allocation5 + $0x660] sm:$0xff]
    %v316 = vld [vmem:[#allocation5 + $0x668] sm:$0xff]
    %v317 = vld [vmem:[#allocation5 + $0x670] sm:$0xff]
    %v318 = vld [vmem:[#allocation5 + $0x678] sm:$0xff]
    %v319 = vld [vmem:[#allocation5 + $0x680] sm:$0xff]
    %v320 = vld [vmem:[#allocation5 + $0x688] sm:$0xff]
    %v321 = vld [vmem:[#allocation5 + $0x690] sm:$0xff]
    %v322 = vld [vmem:[#allocation5 + $0x698] sm:$0xff]
    %v323 = vld [vmem:[#allocation5 + $0x6a0] sm:$0xff]
    %v324 = vld [vmem:[#allocation5 + $0x6a8] sm:$0xff]
    %v325 = vld [vmem:[#allocation5 + $0x6b0] sm:$0xff]
    %v326 = vld [vmem:[#allocation5 + $0x6b8] sm:$0xff]
    %v327 = vld [vmem:[#allocation5 + $0x6c0] sm:$0xff]
    %v328 = vld [vmem:[#allocation5 + $0x6c8] sm:$0xff]
    %v329 = vld [vmem:[#allocation5 + $0x6d0] sm:$0xff]
    %v330 = vld [vmem:[#allocation5 + $0x6d8] sm:$0xff]
    %v331 = vld [vmem:[#allocation5 + $0x6e0] sm:$0xff]
    %v332 = vld [vmem:[#allocation5 + $0x6e8] sm:$0xff]
    %v333 = vld [vmem:[#allocation5 + $0x6f0] sm:$0xff]
    %v334 = vld [vmem:[#allocation5 + $0x6f8] sm:$0xff]
    %v335 = vld [vmem:[#allocation5 + $0x700] sm:$0xff]
    %v336 = vld [vmem:[#allocation5 + $0x708] sm:$0xff]
    %v337 = vld [vmem:[#allocation5 + $0x710] sm:$0xff]
    %v338 = vld [vmem:[#allocation5 + $0x718] sm:$0xff]
    %v339 = vld [vmem:[#allocation5 + $0x720] sm:$0xff]
    %v340 = vld [vmem:[#allocation5 + $0x728] sm:$0xff]
    %v341 = vld [vmem:[#allocation5 + $0x730] sm:$0xff]
    %v342 = vld [vmem:[#allocation5 + $0x738] sm:$0xff]
    %v343 = vld [vmem:[#allocation5 + $0x740] sm:$0xff]
    %v344 = vld [vmem:[#allocation5 + $0x748] sm:$0xff]
    %v345 = vld [vmem:[#allocation5 + $0x750] sm:$0xff]
    %v346 = vld [vmem:[#allocation5 + $0x758] sm:$0xff]
    %v347 = vld [vmem:[#allocation5 + $0x760] sm:$0xff]
    %v348 = vld [vmem:[#allocation5 + $0x768] sm:$0xff]
    %v349 = vld [vmem:[#allocation5 + $0x770] sm:$0xff]
    %v350 = vld [vmem:[#allocation5 + $0x778] sm:$0xff]
    %v351 = vld [vmem:[#allocation5 + $0x780] sm:$0xff]
    %v352 = vld [vmem:[#allocation5 + $0x788] sm:$0xff]
    %v353 = vld [vmem:[#allocation5 + $0x790] sm:$0xff]
    %v354 = vld [vmem:[#allocation5 + $0x798] sm:$0xff]
    %v355 = vld [vmem:[#allocation5 + $0x7a0] sm:$0xff]
    %v356 = vld [vmem:[#allocation5 + $0x7a8] sm:$0xff]
    %v357 = vld [vmem:[#allocation5 + $0x7b0] sm:$0xff]
    %v358 = vld [vmem:[#allocation5 + $0x7b8] sm:$0xff]
    %v359 = vld [vmem:[#allocation5 + $0x7c0] sm:$0xff]
    %v360 = vld [vmem:[#allocation5 + $0x7c8] sm:$0xff]
    %v361 = vld [vmem:[#allocation5 + $0x7d0] sm:$0xff]
    %v362 = vld [vmem:[#allocation5 + $0x7d8] sm:$0xff]
    %v363 = vld [vmem:[#allocation5 + $0x7e0] sm:$0xff]
    %v364 = vld [vmem:[#allocation5 + $0x7e8] sm:$0xff]
    %v365 = vld [vmem:[#allocation5 + $0x7f0] sm:$0xff]
    %v366 = vld [vmem:[#allocation5 + $0x7f8] sm:$0xff]
    %v367 = vld [vmem:[#allocation5 + $0x800] sm:$0xff]
    %v368 = vld [vmem:[#allocation5 + $0x808] sm:$0xff]
    %v369 = vld [vmem:[#allocation5 + $0x810] sm:$0xff]
    %v370 = vld [vmem:[#allocation5 + $0x818] sm:$0xff]
    %v371 = vld [vmem:[#allocation5 + $0x820] sm:$0xff]
    %v372 = vld [vmem:[#allocation5 + $0x828] sm:$0xff]
    %v373 = vld [vmem:[#allocation5 + $0x830] sm:$0xff]
    %v374 = vld [vmem:[#allocation5 + $0x838] sm:$0xff]
    %v375 = vld [vmem:[#allocation5 + $0x840] sm:$0xff]
    %v376 = vld [vmem:[#allocation5 + $0x848] sm:$0xff]
    %v377 = vld [vmem:[#allocation5 + $0x850] sm:$0xff]
    %v378 = vld [vmem:[#allocation5 + $0x858] sm:$0xff]
    %v379 = vld [vmem:[#allocation5 + $0x860] sm:$0xff]
    %v380 = vld [vmem:[#allocation5 + $0x868] sm:$0xff]
    %v381 = vld [vmem:[#allocation5 + $0x870] sm:$0xff]
    %v382 = vld [vmem:[#allocation5 + $0x878] sm:$0xff]
    %v383 = vld [vmem:[#allocation5 + $0x880] sm:$0xff]
    %v384 = vld [vmem:[#allocation5 + $0x888] sm:$0xff]
    %v385 = vld [vmem:[#allocation5 + $0x890] sm:$0xff]
    %v386 = vld [vmem:[#allocation5 + $0x898] sm:$0xff]
    %v387 = vld [vmem:[#allocation5 + $0x8a0] sm:$0xff]
    %v388 = vld [vmem:[#allocation5 + $0x8a8] sm:$0xff]
    %v389 = vld [vmem:[#allocation5 + $0x8b0] sm:$0xff]
    %v390 = vld [vmem:[#allocation5 + $0x8b8] sm:$0xff]
    %v391 = vld [vmem:[#allocation5 + $0x8c0] sm:$0xff]
    %v392 = vld [vmem:[#allocation5 + $0x8c8] sm:$0xff]
    %v393 = vld [vmem:[#allocation5 + $0x8d0] sm:$0xff]
    %v394 = vld [vmem:[#allocation5 + $0x8d8] sm:$0xff]
    %v395 = vld [vmem:[#allocation5 + $0x8e0] sm:$0xff]
    %v396 = vld [vmem:[#allocation5 + $0x8e8] sm:$0xff]
    %v397 = vld [vmem:[#allocation5 + $0x8f0] sm:$0xff]
    %v398 = vld [vmem:[#allocation5 + $0x8f8] sm:$0xff]
    %v399 = vld [vmem:[#allocation7] sm:$0x3f]
    %v401 = vlaneseq
    %v402 = vshrl.u32 %v401, 7
    %v403 = vsub.s32 0, %v402
    %v404 = vrot.slane %v399, %v403
    %v405 = vlaneseq
    %v406 = vshrl.u32 %v405, 7
    %v407 = vsub.s32 1, %v406
    %v408 = vrot.slane %v399, %v407
    %v409 = vlaneseq
    %v410 = vshrl.u32 %v409, 7
    %v411 = vsub.s32 2, %v410
    %v412 = vrot.slane %v399, %v411
    %v413 = vlaneseq
    %v414 = vshrl.u32 %v413, 7
    %v415 = vsub.s32 3, %v414
    %v416 = vrot.slane %v399, %v415
    %v417 = vlaneseq
    %v418 = vshrl.u32 %v417, 7
    %v419 = vsub.s32 4, %v418
    %v420 = vrot.slane %v399, %v419
    %v421 = vlaneseq
    %v422 = vshrl.u32 %v421, 7
    %v423 = vsub.s32 5, %v422
    %v424 = vrot.slane %v399, %v423
    %v719 = vunpack.c.l.b16 %v111
    %v720 = vunpack.c.h.b16 %v111
    %v721 = vunpack.c.l.b16 %v112
    %v722 = vunpack.c.h.b16 %v112
    %v723 = vunpack.c.l.b16 %v113
    %v724 = vunpack.c.h.b16 %v113
    %v725 = vunpack.c.l.b16 %v114
    %v726 = vunpack.c.h.b16 %v114
    %v727 = vunpack.c.l.b16 %v115
    %v728 = vunpack.c.h.b16 %v115
    %v729 = vunpack.c.l.b16 %v116
    %v730 = vunpack.c.h.b16 %v116
    %v731 = vunpack.c.l.b16 %v117
    %v732 = vunpack.c.h.b16 %v117
    %v733 = vunpack.c.l.b16 %v118
    %v734 = vunpack.c.h.b16 %v118
    %v735 = vunpack.c.l.b16 %v119
    %v736 = vunpack.c.h.b16 %v119
    %v737 = vunpack.c.l.b16 %v120
    %v738 = vunpack.c.h.b16 %v120
    %v739 = vunpack.c.l.b16 %v121
    %v740 = vunpack.c.h.b16 %v121
    %v741 = vunpack.c.l.b16 %v122
    %v742 = vunpack.c.h.b16 %v122
    %v743 = vunpack.c.l.b16 %v123
    %v744 = vunpack.c.h.b16 %v123
    %v745 = vunpack.c.l.b16 %v124
    %v746 = vunpack.c.h.b16 %v124
    %v747 = vunpack.c.l.b16 %v125
    %v748 = vunpack.c.h.b16 %v125
    %v749 = vunpack.c.l.b16 %v126
    %v750 = vunpack.c.h.b16 %v126
    %v751 = vunpack.c.l.b16 %v127
    %v752 = vunpack.c.h.b16 %v127
    %v753 = vunpack.c.l.b16 %v128
    %v754 = vunpack.c.h.b16 %v128
    %v755 = vunpack.c.l.b16 %v129
    %v756 = vunpack.c.h.b16 %v129
    %v757 = vunpack.c.l.b16 %v130
    %v758 = vunpack.c.h.b16 %v130
    %v759 = vunpack.c.l.b16 %v131
    %v760 = vunpack.c.h.b16 %v131
    %v761 = vunpack.c.l.b16 %v132
    %v762 = vunpack.c.h.b16 %v132
    %v763 = vunpack.c.l.b16 %v133
    %v764 = vunpack.c.h.b16 %v133
    %v765 = vunpack.c.l.b16 %v134
    %v766 = vunpack.c.h.b16 %v134
    %v767 = vunpack.c.l.b16 %v135
    %v768 = vunpack.c.h.b16 %v135
    %v769 = vunpack.c.l.b16 %v136
    %v770 = vunpack.c.h.b16 %v136
    %v771 = vunpack.c.l.b16 %v137
    %v772 = vunpack.c.h.b16 %v137
    %v773 = vunpack.c.l.b16 %v138
    %v774 = vunpack.c.h.b16 %v138
    %v775 = vunpack.c.l.b16 %v139
    %v776 = vunpack.c.h.b16 %v139
    %v777 = vunpack.c.l.b16 %v140
    %v778 = vunpack.c.h.b16 %v140
    %v779 = vunpack.c.l.b16 %v141
    %v780 = vunpack.c.h.b16 %v141
    %v781 = vunpack.c.l.b16 %v142
    %v782 = vunpack.c.h.b16 %v142
    %v783 = vunpack.c.l.b16 %v143
    %v784 = vunpack.c.h.b16 %v143
    %v785 = vunpack.c.l.b16 %v144
    %v786 = vunpack.c.h.b16 %v144
    %v787 = vunpack.c.l.b16 %v145
    %v788 = vunpack.c.h.b16 %v145
    %v789 = vunpack.c.l.b16 %v146
    %v790 = vunpack.c.h.b16 %v146
    %v791 = vunpack.c.l.b16 %v147
    %v792 = vunpack.c.h.b16 %v147
    %v793 = vunpack.c.l.b16 %v148
    %v794 = vunpack.c.h.b16 %v148
    %v795 = vunpack.c.l.b16 %v149
    %v796 = vunpack.c.h.b16 %v149
    %v797 = vunpack.c.l.b16 %v150
    %v798 = vunpack.c.h.b16 %v150
    %v799 = vunpack.c.l.b16 %v151
    %v800 = vunpack.c.h.b16 %v151
    %v801 = vunpack.c.l.b16 %v152
    %v802 = vunpack.c.h.b16 %v152
    %v803 = vunpack.c.l.b16 %v153
    %v804 = vunpack.c.h.b16 %v153
    %v805 = vunpack.c.l.b16 %v154
    %v806 = vunpack.c.h.b16 %v154
    %v807 = vunpack.c.l.b16 %v155
    %v808 = vunpack.c.h.b16 %v155
    %v809 = vunpack.c.l.b16 %v156
    %v810 = vunpack.c.h.b16 %v156
    %v811 = vunpack.c.l.b16 %v157
    %v812 = vunpack.c.h.b16 %v157
    %v813 = vunpack.c.l.b16 %v158
    %v814 = vunpack.c.h.b16 %v158
    %v815 = vunpack.c.l.b16 %v159
    %v816 = vunpack.c.h.b16 %v159
    %v817 = vunpack.c.l.b16 %v160
    %v818 = vunpack.c.h.b16 %v160
    %v819 = vunpack.c.l.b16 %v161
    %v820 = vunpack.c.h.b16 %v161
    %v821 = vunpack.c.l.b16 %v162
    %v822 = vunpack.c.h.b16 %v162
    %v823 = vunpack.c.l.b16 %v163
    %v824 = vunpack.c.h.b16 %v163
    %v825 = vunpack.c.l.b16 %v164
    %v826 = vunpack.c.h.b16 %v164
    %v827 = vunpack.c.l.b16 %v165
    %v828 = vunpack.c.h.b16 %v165
    %v829 = vunpack.c.l.b16 %v166
    %v830 = vunpack.c.h.b16 %v166
    %v831 = vunpack.c.l.b16 %v167
    %v832 = vunpack.c.h.b16 %v167
    %v833 = vunpack.c.l.b16 %v168
    %v834 = vunpack.c.h.b16 %v168
    %v835 = vunpack.c.l.b16 %v169
    %v836 = vunpack.c.h.b16 %v169
    %v837 = vunpack.c.l.b16 %v170
    %v838 = vunpack.c.h.b16 %v170
    %v839 = vunpack.c.l.b16 %v171
    %v840 = vunpack.c.h.b16 %v171
    %v841 = vunpack.c.l.b16 %v172
    %v842 = vunpack.c.h.b16 %v172
    %v843 = vunpack.c.l.b16 %v173
    %v844 = vunpack.c.h.b16 %v173
    %v845 = vunpack.c.l.b16 %v174
    %v846 = vunpack.c.h.b16 %v174
    %v847 = vunpack.c.l.b16 %v175
    %v848 = vunpack.c.h.b16 %v175
    %v849 = vunpack.c.l.b16 %v176
    %v850 = vunpack.c.h.b16 %v176
    %v851 = vunpack.c.l.b16 %v177
    %v852 = vunpack.c.h.b16 %v177
    %v853 = vunpack.c.l.b16 %v178
    %v854 = vunpack.c.h.b16 %v178
    %v855 = vunpack.c.l.b16 %v179
    %v856 = vunpack.c.h.b16 %v179
    %v857 = vunpack.c.l.b16 %v180
    %v858 = vunpack.c.h.b16 %v180
    %v859 = vunpack.c.l.b16 %v181
    %v860 = vunpack.c.h.b16 %v181
    %v861 = vunpack.c.l.b16 %v182
    %v862 = vunpack.c.h.b16 %v182
    %v863 = vunpack.c.l.b16 %v183
    %v864 = vunpack.c.h.b16 %v183
    %v865 = vunpack.c.l.b16 %v184
    %v866 = vunpack.c.h.b16 %v184
    %v867 = vunpack.c.l.b16 %v185
    %v868 = vunpack.c.h.b16 %v185
    %v869 = vunpack.c.l.b16 %v186
    %v870 = vunpack.c.h.b16 %v186
    %v871 = vunpack.c.l.b16 %v187
    %v872 = vunpack.c.h.b16 %v187
    %v873 = vunpack.c.l.b16 %v188
    %v874 = vunpack.c.h.b16 %v188
    %v875 = vunpack.c.l.b16 %v189
    %v876 = vunpack.c.h.b16 %v189
    %v877 = vunpack.c.l.b16 %v190
    %v878 = vunpack.c.h.b16 %v190
    %v879 = vunpack.c.l.b16 %v191
    %v880 = vunpack.c.h.b16 %v191
    %v881 = vunpack.c.l.b16 %v192
    %v882 = vunpack.c.h.b16 %v192
    %v883 = vunpack.c.l.b16 %v193
    %v884 = vunpack.c.h.b16 %v193
    %v885 = vunpack.c.l.b16 %v194
    %v886 = vunpack.c.h.b16 %v194
    %v887 = vunpack.c.l.b16 %v195
    %v888 = vunpack.c.h.b16 %v195
    %v889 = vunpack.c.l.b16 %v196
    %v890 = vunpack.c.h.b16 %v196
    %v891 = vunpack.c.l.b16 %v197
    %v892 = vunpack.c.h.b16 %v197
    %v893 = vunpack.c.l.b16 %v198
    %v894 = vunpack.c.h.b16 %v198
    %v895 = vunpack.c.l.b16 %v199
    %v896 = vunpack.c.h.b16 %v199
    %v897 = vunpack.c.l.b16 %v200
    %v898 = vunpack.c.h.b16 %v200
    %v899 = vunpack.c.l.b16 %v201
    %v900 = vunpack.c.h.b16 %v201
    %v901 = vunpack.c.l.b16 %v202
    %v902 = vunpack.c.h.b16 %v202
    %v903 = vunpack.c.l.b16 %v203
    %v904 = vunpack.c.h.b16 %v203
    %v905 = vunpack.c.l.b16 %v204
    %v906 = vunpack.c.h.b16 %v204
    %v907 = vunpack.c.l.b16 %v205
    %v908 = vunpack.c.h.b16 %v205
    %v909 = vunpack.c.l.b16 %v206
    %v910 = vunpack.c.h.b16 %v206
    %v911 = vunpack.c.l.b16 %v207
    %v912 = vunpack.c.h.b16 %v207
    %v913 = vunpack.c.l.b16 %v208
    %v914 = vunpack.c.h.b16 %v208
    %v915 = vunpack.c.l.b16 %v209
    %v916 = vunpack.c.h.b16 %v209
    %v917 = vunpack.c.l.b16 %v210
    %v918 = vunpack.c.h.b16 %v210
    %v919 = vunpack.c.l.b16 %v211
    %v920 = vunpack.c.h.b16 %v211
    %v921 = vunpack.c.l.b16 %v212
    %v922 = vunpack.c.h.b16 %v212
    %v923 = vunpack.c.l.b16 %v213
    %v924 = vunpack.c.h.b16 %v213
    %v925 = vunpack.c.l.b16 %v214
    %v926 = vunpack.c.h.b16 %v214
    %v927 = vunpack.c.l.b16 %v215
    %v928 = vunpack.c.h.b16 %v215
    %v929 = vunpack.c.l.b16 %v216
    %v930 = vunpack.c.h.b16 %v216
    %v931 = vunpack.c.l.b16 %v217
    %v932 = vunpack.c.h.b16 %v217
    %v933 = vunpack.c.l.b16 %v218
    %v934 = vunpack.c.h.b16 %v218
    %v935 = vunpack.c.l.b16 %v219
    %v936 = vunpack.c.h.b16 %v219
    %v937 = vunpack.c.l.b16 %v220
    %v938 = vunpack.c.h.b16 %v220
    %v939 = vunpack.c.l.b16 %v221
    %v940 = vunpack.c.h.b16 %v221
    %v941 = vunpack.c.l.b16 %v222
    %v942 = vunpack.c.h.b16 %v222
    %v943 = vunpack.c.l.b16 %v223
    %v944 = vunpack.c.h.b16 %v223
    %v945 = vunpack.c.l.b16 %v224
    %v946 = vunpack.c.h.b16 %v224
    %v947 = vunpack.c.l.b16 %v225
    %v948 = vunpack.c.h.b16 %v225
    %v949 = vunpack.c.l.b16 %v226
    %v950 = vunpack.c.h.b16 %v226
    %v951 = vunpack.c.l.b16 %v227
    %v952 = vunpack.c.h.b16 %v227
    %v953 = vunpack.c.l.b16 %v228
    %v954 = vunpack.c.h.b16 %v228
    %v955 = vunpack.c.l.b16 %v229
    %v956 = vunpack.c.h.b16 %v229
    %v957 = vunpack.c.l.b16 %v230
    %v958 = vunpack.c.h.b16 %v230
    %v959 = vunpack.c.l.b16 %v231
    %v960 = vunpack.c.h.b16 %v231
    %v961 = vunpack.c.l.b16 %v232
    %v962 = vunpack.c.h.b16 %v232
    %v963 = vunpack.c.l.b16 %v233
    %v964 = vunpack.c.h.b16 %v233
    %v965 = vunpack.c.l.b16 %v234
    %v966 = vunpack.c.h.b16 %v234
    %v967 = vunpack.c.l.b16 %v235
    %v968 = vunpack.c.h.b16 %v235
    %v969 = vunpack.c.l.b16 %v236
    %v970 = vunpack.c.h.b16 %v236
    %v971 = vunpack.c.l.b16 %v237
    %v972 = vunpack.c.h.b16 %v237
    %v973 = vunpack.c.l.b16 %v238
    %v974 = vunpack.c.h.b16 %v238
    %v975 = vunpack.c.l.b16 %v239
    %v976 = vunpack.c.h.b16 %v239
    %v977 = vunpack.c.l.b16 %v240
    %v978 = vunpack.c.h.b16 %v240
    %v979 = vunpack.c.l.b16 %v241
    %v980 = vunpack.c.h.b16 %v241
    %v981 = vunpack.c.l.b16 %v242
    %v982 = vunpack.c.h.b16 %v242
    %v983 = vunpack.c.l.b16 %v243
    %v984 = vunpack.c.h.b16 %v243
    %v985 = vunpack.c.l.b16 %v244
    %v986 = vunpack.c.h.b16 %v244
    %v987 = vunpack.c.l.b16 %v245
    %v988 = vunpack.c.h.b16 %v245
    %v989 = vunpack.c.l.b16 %v246
    %v990 = vunpack.c.h.b16 %v246
    %v991 = vunpack.c.l.b16 %v247
    %v992 = vunpack.c.h.b16 %v247
    %v993 = vunpack.c.l.b16 %v248
    %v994 = vunpack.c.h.b16 %v248
    %v995 = vunpack.c.l.b16 %v249
    %v996 = vunpack.c.h.b16 %v249
    %v997 = vunpack.c.l.b16 %v250
    %v998 = vunpack.c.h.b16 %v250
    %v999 = vunpack.c.l.b16 %v251
    %v1000 = vunpack.c.h.b16 %v251
    %v1001 = vunpack.c.l.b16 %v252
    %v1002 = vunpack.c.h.b16 %v252
    %v1003 = vunpack.c.l.b16 %v253
    %v1004 = vunpack.c.h.b16 %v253
    %v1005 = vunpack.c.l.b16 %v254
    %v1006 = vunpack.c.h.b16 %v254
    %v1007 = vunpack.c.l.b16 %v255
    %v1008 = vunpack.c.h.b16 %v255
    %v1009 = vunpack.c.l.b16 %v256
    %v1010 = vunpack.c.h.b16 %v256
    %v1011 = vunpack.c.l.b16 %v257
    %v1012 = vunpack.c.h.b16 %v257
    %v1013 = vunpack.c.l.b16 %v258
    %v1014 = vunpack.c.h.b16 %v258
    %v1015 = vunpack.c.l.b16 %v259
    %v1016 = vunpack.c.h.b16 %v259
    %v1017 = vunpack.c.l.b16 %v260
    %v1018 = vunpack.c.h.b16 %v260
    %v1019 = vunpack.c.l.b16 %v261
    %v1020 = vunpack.c.h.b16 %v261
    %v1021 = vunpack.c.l.b16 %v262
    %v1022 = vunpack.c.h.b16 %v262
    %v1023 = vunpack.c.l.b16 %v263
    %v1024 = vunpack.c.h.b16 %v263
    %v1025 = vunpack.c.l.b16 %v264
    %v1026 = vunpack.c.h.b16 %v264
    %v1027 = vunpack.c.l.b16 %v265
    %v1028 = vunpack.c.h.b16 %v265
    %v1029 = vunpack.c.l.b16 %v266
    %v1030 = vunpack.c.h.b16 %v266
    %v1031 = vunpack.c.l.b16 %v267
    %v1032 = vunpack.c.h.b16 %v267
    %v1033 = vunpack.c.l.b16 %v268
    %v1034 = vunpack.c.h.b16 %v268
    %v1035 = vunpack.c.l.b16 %v269
    %v1036 = vunpack.c.h.b16 %v269
    %v1037 = vunpack.c.l.b16 %v270
    %v1038 = vunpack.c.h.b16 %v270
    %v1039 = vunpack.c.l.b16 %v271
    %v1040 = vunpack.c.h.b16 %v271
    %v1041 = vunpack.c.l.b16 %v272
    %v1042 = vunpack.c.h.b16 %v272
    %v1043 = vunpack.c.l.b16 %v273
    %v1044 = vunpack.c.h.b16 %v273
    %v1045 = vunpack.c.l.b16 %v274
    %v1046 = vunpack.c.h.b16 %v274
    %v1047 = vunpack.c.l.b16 %v275
    %v1048 = vunpack.c.h.b16 %v275
    %v1049 = vunpack.c.l.b16 %v276
    %v1050 = vunpack.c.h.b16 %v276
    %v1051 = vunpack.c.l.b16 %v277
    %v1052 = vunpack.c.h.b16 %v277
    %v1053 = vunpack.c.l.b16 %v278
    %v1054 = vunpack.c.h.b16 %v278
    %v1055 = vunpack.c.l.b16 %v279
    %v1056 = vunpack.c.h.b16 %v279
    %v1057 = vunpack.c.l.b16 %v280
    %v1058 = vunpack.c.h.b16 %v280
    %v1059 = vunpack.c.l.b16 %v281
    %v1060 = vunpack.c.h.b16 %v281
    %v1061 = vunpack.c.l.b16 %v282
    %v1062 = vunpack.c.h.b16 %v282
    %v1063 = vunpack.c.l.b16 %v283
    %v1064 = vunpack.c.h.b16 %v283
    %v1065 = vunpack.c.l.b16 %v284
    %v1066 = vunpack.c.h.b16 %v284
    %v1067 = vunpack.c.l.b16 %v285
    %v1068 = vunpack.c.h.b16 %v285
    %v1069 = vunpack.c.l.b16 %v286
    %v1070 = vunpack.c.h.b16 %v286
    %v1071 = vunpack.c.l.b16 %v287
    %v1072 = vunpack.c.h.b16 %v287
    %v1073 = vunpack.c.l.b16 %v288
    %v1074 = vunpack.c.h.b16 %v288
    %v1075 = vunpack.c.l.b16 %v289
    %v1076 = vunpack.c.h.b16 %v289
    %v1077 = vunpack.c.l.b16 %v290
    %v1078 = vunpack.c.h.b16 %v290
    %v1079 = vunpack.c.l.b16 %v291
    %v1080 = vunpack.c.h.b16 %v291
    %v1081 = vunpack.c.l.b16 %v292
    %v1082 = vunpack.c.h.b16 %v292
    %v1083 = vunpack.c.l.b16 %v293
    %v1084 = vunpack.c.h.b16 %v293
    %v1085 = vunpack.c.l.b16 %v294
    %v1086 = vunpack.c.h.b16 %v294
    %v1087 = vunpack.c.l.b16 %v295
    %v1088 = vunpack.c.h.b16 %v295
    %v1089 = vunpack.c.l.b16 %v296
    %v1090 = vunpack.c.h.b16 %v296
    %v1091 = vunpack.c.l.b16 %v297
    %v1092 = vunpack.c.h.b16 %v297
    %v1093 = vunpack.c.l.b16 %v298
    %v1094 = vunpack.c.h.b16 %v298
    %v1095 = vunpack.c.l.b16 %v299
    %v1096 = vunpack.c.h.b16 %v299
    %v1097 = vunpack.c.l.b16 %v300
    %v1098 = vunpack.c.h.b16 %v300
    %v1099 = vunpack.c.l.b16 %v301
    %v1100 = vunpack.c.h.b16 %v301
    %v1101 = vunpack.c.l.b16 %v302
    %v1102 = vunpack.c.h.b16 %v302
    %v1103 = vunpack.c.l.b16 %v303
    %v1104 = vunpack.c.h.b16 %v303
    %v1105 = vunpack.c.l.b16 %v304
    %v1106 = vunpack.c.h.b16 %v304
    %v1107 = vunpack.c.l.b16 %v305
    %v1108 = vunpack.c.h.b16 %v305
    %v1109 = vunpack.c.l.b16 %v306
    %v1110 = vunpack.c.h.b16 %v306
    %v1111 = vunpack.c.l.b16 %v307
    %v1112 = vunpack.c.h.b16 %v307
    %v1113 = vunpack.c.l.b16 %v308
    %v1114 = vunpack.c.h.b16 %v308
    %v1115 = vunpack.c.l.b16 %v309
    %v1116 = vunpack.c.h.b16 %v309
    %v1117 = vunpack.c.l.b16 %v310
    %v1118 = vunpack.c.h.b16 %v310
    %v1119 = vunpack.c.l.b16 %v311
    %v1120 = vunpack.c.h.b16 %v311
    %v1121 = vunpack.c.l.b16 %v312
    %v1122 = vunpack.c.h.b16 %v312
    %v1123 = vunpack.c.l.b16 %v313
    %v1124 = vunpack.c.h.b16 %v313
    %v1125 = vunpack.c.l.b16 %v314
    %v1126 = vunpack.c.h.b16 %v314
    %v1127 = vunpack.c.l.b16 %v315
    %v1128 = vunpack.c.h.b16 %v315
    %v1129 = vunpack.c.l.b16 %v316
    %v1130 = vunpack.c.h.b16 %v316
    %v1131 = vunpack.c.l.b16 %v317
    %v1132 = vunpack.c.h.b16 %v317
    %v1133 = vunpack.c.l.b16 %v318
    %v1134 = vunpack.c.h.b16 %v318
    %v1135 = vunpack.c.l.b16 %v319
    %v1136 = vunpack.c.h.b16 %v319
    %v1137 = vunpack.c.l.b16 %v320
    %v1138 = vunpack.c.h.b16 %v320
    %v1139 = vunpack.c.l.b16 %v321
    %v1140 = vunpack.c.h.b16 %v321
    %v1141 = vunpack.c.l.b16 %v322
    %v1142 = vunpack.c.h.b16 %v322
    %v1143 = vunpack.c.l.b16 %v323
    %v1144 = vunpack.c.h.b16 %v323
    %v1145 = vunpack.c.l.b16 %v324
    %v1146 = vunpack.c.h.b16 %v324
    %v1147 = vunpack.c.l.b16 %v325
    %v1148 = vunpack.c.h.b16 %v325
    %v1149 = vunpack.c.l.b16 %v326
    %v1150 = vunpack.c.h.b16 %v326
    %v1151 = vunpack.c.l.b16 %v327
    %v1152 = vunpack.c.h.b16 %v327
    %v1153 = vunpack.c.l.b16 %v328
    %v1154 = vunpack.c.h.b16 %v328
    %v1155 = vunpack.c.l.b16 %v329
    %v1156 = vunpack.c.h.b16 %v329
    %v1157 = vunpack.c.l.b16 %v330
    %v1158 = vunpack.c.h.b16 %v330
    %v1159 = vunpack.c.l.b16 %v331
    %v1160 = vunpack.c.h.b16 %v331
    %v1161 = vunpack.c.l.b16 %v332
    %v1162 = vunpack.c.h.b16 %v332
    %v1163 = vunpack.c.l.b16 %v333
    %v1164 = vunpack.c.h.b16 %v333
    %v1165 = vunpack.c.l.b16 %v334
    %v1166 = vunpack.c.h.b16 %v334
    %v1167 = vunpack.c.l.b16 %v335
    %v1168 = vunpack.c.h.b16 %v335
    %v1169 = vunpack.c.l.b16 %v336
    %v1170 = vunpack.c.h.b16 %v336
    %v1171 = vunpack.c.l.b16 %v337
    %v1172 = vunpack.c.h.b16 %v337
    %v1173 = vunpack.c.l.b16 %v338
    %v1174 = vunpack.c.h.b16 %v338
    %v1175 = vunpack.c.l.b16 %v339
    %v1176 = vunpack.c.h.b16 %v339
    %v1177 = vunpack.c.l.b16 %v340
    %v1178 = vunpack.c.h.b16 %v340
    %v1179 = vunpack.c.l.b16 %v341
    %v1180 = vunpack.c.h.b16 %v341
    %v1181 = vunpack.c.l.b16 %v342
    %v1182 = vunpack.c.h.b16 %v342
    %v1183 = vunpack.c.l.b16 %v343
    %v1184 = vunpack.c.h.b16 %v343
    %v1185 = vunpack.c.l.b16 %v344
    %v1186 = vunpack.c.h.b16 %v344
    %v1187 = vunpack.c.l.b16 %v345
    %v1188 = vunpack.c.h.b16 %v345
    %v1189 = vunpack.c.l.b16 %v346
    %v1190 = vunpack.c.h.b16 %v346
    %v1191 = vunpack.c.l.b16 %v347
    %v1192 = vunpack.c.h.b16 %v347
    %v1193 = vunpack.c.l.b16 %v348
    %v1194 = vunpack.c.h.b16 %v348
    %v1195 = vunpack.c.l.b16 %v349
    %v1196 = vunpack.c.h.b16 %v349
    %v1197 = vunpack.c.l.b16 %v350
    %v1198 = vunpack.c.h.b16 %v350
    %v1199 = vunpack.c.l.b16 %v351
    %v1200 = vunpack.c.h.b16 %v351
    %v1201 = vunpack.c.l.b16 %v352
    %v1202 = vunpack.c.h.b16 %v352
    %v1203 = vunpack.c.l.b16 %v353
    %v1204 = vunpack.c.h.b16 %v353
    %v1205 = vunpack.c.l.b16 %v354
    %v1206 = vunpack.c.h.b16 %v354
    %v1207 = vunpack.c.l.b16 %v355
    %v1208 = vunpack.c.h.b16 %v355
    %v1209 = vunpack.c.l.b16 %v356
    %v1210 = vunpack.c.h.b16 %v356
    %v1211 = vunpack.c.l.b16 %v357
    %v1212 = vunpack.c.h.b16 %v357
    %v1213 = vunpack.c.l.b16 %v358
    %v1214 = vunpack.c.h.b16 %v358
    %v1215 = vunpack.c.l.b16 %v359
    %v1216 = vunpack.c.h.b16 %v359
    %v1217 = vunpack.c.l.b16 %v360
    %v1218 = vunpack.c.h.b16 %v360
    %v1219 = vunpack.c.l.b16 %v361
    %v1220 = vunpack.c.h.b16 %v361
    %v1221 = vunpack.c.l.b16 %v362
    %v1222 = vunpack.c.h.b16 %v362
    %v1223 = vunpack.c.l.b16 %v363
    %v1224 = vunpack.c.h.b16 %v363
    %v1225 = vunpack.c.l.b16 %v364
    %v1226 = vunpack.c.h.b16 %v364
    %v1227 = vunpack.c.l.b16 %v365
    %v1228 = vunpack.c.h.b16 %v365
    %v1229 = vunpack.c.l.b16 %v366
    %v1230 = vunpack.c.h.b16 %v366
    %v1231 = vunpack.c.l.b16 %v367
    %v1232 = vunpack.c.h.b16 %v367
    %v1233 = vunpack.c.l.b16 %v368
    %v1234 = vunpack.c.h.b16 %v368
    %v1235 = vunpack.c.l.b16 %v369
    %v1236 = vunpack.c.h.b16 %v369
    %v1237 = vunpack.c.l.b16 %v370
    %v1238 = vunpack.c.h.b16 %v370
    %v1239 = vunpack.c.l.b16 %v371
    %v1240 = vunpack.c.h.b16 %v371
    %v1241 = vunpack.c.l.b16 %v372
    %v1242 = vunpack.c.h.b16 %v372
    %v1243 = vunpack.c.l.b16 %v373
    %v1244 = vunpack.c.h.b16 %v373
    %v1245 = vunpack.c.l.b16 %v374
    %v1246 = vunpack.c.h.b16 %v374
    %v1247 = vunpack.c.l.b16 %v375
    %v1248 = vunpack.c.h.b16 %v375
    %v1249 = vunpack.c.l.b16 %v376
    %v1250 = vunpack.c.h.b16 %v376
    %v1251 = vunpack.c.l.b16 %v377
    %v1252 = vunpack.c.h.b16 %v377
    %v1253 = vunpack.c.l.b16 %v378
    %v1254 = vunpack.c.h.b16 %v378
    %v1255 = vunpack.c.l.b16 %v379
    %v1256 = vunpack.c.h.b16 %v379
    %v1257 = vunpack.c.l.b16 %v380
    %v1258 = vunpack.c.h.b16 %v380
    %v1259 = vunpack.c.l.b16 %v381
    %v1260 = vunpack.c.h.b16 %v381
    %v1261 = vunpack.c.l.b16 %v382
    %v1262 = vunpack.c.h.b16 %v382
    %v1263 = vunpack.c.l.b16 %v383
    %v1264 = vunpack.c.h.b16 %v383
    %v1265 = vunpack.c.l.b16 %v384
    %v1266 = vunpack.c.h.b16 %v384
    %v1267 = vunpack.c.l.b16 %v385
    %v1268 = vunpack.c.h.b16 %v385
    %v1269 = vunpack.c.l.b16 %v386
    %v1270 = vunpack.c.h.b16 %v386
    %v1271 = vunpack.c.l.b16 %v387
    %v1272 = vunpack.c.h.b16 %v387
    %v1273 = vunpack.c.l.b16 %v388
    %v1274 = vunpack.c.h.b16 %v388
    %v1275 = vunpack.c.l.b16 %v389
    %v1276 = vunpack.c.h.b16 %v389
    %v1277 = vunpack.c.l.b16 %v390
    %v1278 = vunpack.c.h.b16 %v390
    %v1279 = vunpack.c.l.b16 %v391
    %v1280 = vunpack.c.h.b16 %v391
    %v1281 = vunpack.c.l.b16 %v392
    %v1282 = vunpack.c.h.b16 %v392
    %v1283 = vunpack.c.l.b16 %v393
    %v1284 = vunpack.c.h.b16 %v393
    %v1285 = vunpack.c.l.b16 %v394
    %v1286 = vunpack.c.h.b16 %v394
    %v1287 = vunpack.c.l.b16 %v395
    %v1288 = vunpack.c.h.b16 %v395
    %v1289 = vunpack.c.l.b16 %v396
    %v1290 = vunpack.c.h.b16 %v396
    %v1291 = vunpack.c.l.b16 %v397
    %v1292 = vunpack.c.h.b16 %v397
    %v1293 = vunpack.c.l.b16 %v398
    %v1294 = vunpack.c.h.b16 %v398
    %v1295 = vpack.c.b16 %v725, %v719
    %v1296 = vpack.c.b16 %v726, %v720
    %v1297 = vpack.c.b16 %v727, %v721
    %v1298 = vpack.c.b16 %v728, %v722
    %v1299 = vpack.c.b16 %v729, %v723
    %v1300 = vpack.c.b16 %v730, %v724
    %v1301 = vpack.c.b16 %v737, %v731
    %v1302 = vpack.c.b16 %v738, %v732
    %v1303 = vpack.c.b16 %v739, %v733
    %v1304 = vpack.c.b16 %v740, %v734
    %v1305 = vpack.c.b16 %v741, %v735
    %v1306 = vpack.c.b16 %v742, %v736
    %v1307 = vpack.c.b16 %v749, %v743
    %v1308 = vpack.c.b16 %v750, %v744
    %v1309 = vpack.c.b16 %v751, %v745
    %v1310 = vpack.c.b16 %v752, %v746
    %v1311 = vpack.c.b16 %v753, %v747
    %v1312 = vpack.c.b16 %v754, %v748
    %v1313 = vpack.c.b16 %v761, %v755
    %v1314 = vpack.c.b16 %v762, %v756
    %v1315 = vpack.c.b16 %v763, %v757
    %v1316 = vpack.c.b16 %v764, %v758
    %v1317 = vpack.c.b16 %v765, %v759
    %v1318 = vpack.c.b16 %v766, %v760
    %v1319 = vpack.c.b16 %v773, %v767
    %v1320 = vpack.c.b16 %v774, %v768
    %v1321 = vpack.c.b16 %v775, %v769
    %v1322 = vpack.c.b16 %v776, %v770
    %v1323 = vpack.c.b16 %v777, %v771
    %v1324 = vpack.c.b16 %v778, %v772
    %v1325 = vpack.c.b16 %v785, %v779
    %v1326 = vpack.c.b16 %v786, %v780
    %v1327 = vpack.c.b16 %v787, %v781
    %v1328 = vpack.c.b16 %v788, %v782
    %v1329 = vpack.c.b16 %v789, %v783
    %v1330 = vpack.c.b16 %v790, %v784
    %v1331 = vpack.c.b16 %v797, %v791
    %v1332 = vpack.c.b16 %v798, %v792
    %v1333 = vpack.c.b16 %v799, %v793
    %v1334 = vpack.c.b16 %v800, %v794
    %v1335 = vpack.c.b16 %v801, %v795
    %v1336 = vpack.c.b16 %v802, %v796
    %v1337 = vpack.c.b16 %v809, %v803
    %v1338 = vpack.c.b16 %v810, %v804
    %v1339 = vpack.c.b16 %v811, %v805
    %v1340 = vpack.c.b16 %v812, %v806
    %v1341 = vpack.c.b16 %v813, %v807
    %v1342 = vpack.c.b16 %v814, %v808
    %v1343 = vpack.c.b16 %v821, %v815
    %v1344 = vpack.c.b16 %v822, %v816
    %v1345 = vpack.c.b16 %v823, %v817
    %v1346 = vpack.c.b16 %v824, %v818
    %v1347 = vpack.c.b16 %v825, %v819
    %v1348 = vpack.c.b16 %v826, %v820
    %v1349 = vpack.c.b16 %v833, %v827
    %v1350 = vpack.c.b16 %v834, %v828
    %v1351 = vpack.c.b16 %v835, %v829
    %v1352 = vpack.c.b16 %v836, %v830
    %v1353 = vpack.c.b16 %v837, %v831
    %v1354 = vpack.c.b16 %v838, %v832
    %v1355 = vpack.c.b16 %v845, %v839
    %v1356 = vpack.c.b16 %v846, %v840
    %v1357 = vpack.c.b16 %v847, %v841
    %v1358 = vpack.c.b16 %v848, %v842
    %v1359 = vpack.c.b16 %v849, %v843
    %v1360 = vpack.c.b16 %v850, %v844
    %v1361 = vpack.c.b16 %v857, %v851
    %v1362 = vpack.c.b16 %v858, %v852
    %v1363 = vpack.c.b16 %v859, %v853
    %v1364 = vpack.c.b16 %v860, %v854
    %v1365 = vpack.c.b16 %v861, %v855
    %v1366 = vpack.c.b16 %v862, %v856
    %v1367 = vpack.c.b16 %v869, %v863
    %v1368 = vpack.c.b16 %v870, %v864
    %v1369 = vpack.c.b16 %v871, %v865
    %v1370 = vpack.c.b16 %v872, %v866
    %v1371 = vpack.c.b16 %v873, %v867
    %v1372 = vpack.c.b16 %v874, %v868
    %v1373 = vpack.c.b16 %v881, %v875
    %v1374 = vpack.c.b16 %v882, %v876
    %v1375 = vpack.c.b16 %v883, %v877
    %v1376 = vpack.c.b16 %v884, %v878
    %v1377 = vpack.c.b16 %v885, %v879
    %v1378 = vpack.c.b16 %v886, %v880
    %v1379 = vpack.c.b16 %v893, %v887
    %v1380 = vpack.c.b16 %v894, %v888
    %v1381 = vpack.c.b16 %v895, %v889
    %v1382 = vpack.c.b16 %v896, %v890
    %v1383 = vpack.c.b16 %v897, %v891
    %v1384 = vpack.c.b16 %v898, %v892
    %v1385 = vpack.c.b16 %v905, %v899
    %v1386 = vpack.c.b16 %v906, %v900
    %v1387 = vpack.c.b16 %v907, %v901
    %v1388 = vpack.c.b16 %v908, %v902
    %v1389 = vpack.c.b16 %v909, %v903
    %v1390 = vpack.c.b16 %v910, %v904
    %v1391 = vpack.c.b16 %v917, %v911
    %v1392 = vpack.c.b16 %v918, %v912
    %v1393 = vpack.c.b16 %v919, %v913
    %v1394 = vpack.c.b16 %v920, %v914
    %v1395 = vpack.c.b16 %v921, %v915
    %v1396 = vpack.c.b16 %v922, %v916
    %v1397 = vpack.c.b16 %v929, %v923
    %v1398 = vpack.c.b16 %v930, %v924
    %v1399 = vpack.c.b16 %v931, %v925
    %v1400 = vpack.c.b16 %v932, %v926
    %v1401 = vpack.c.b16 %v933, %v927
    %v1402 = vpack.c.b16 %v934, %v928
    %v1403 = vpack.c.b16 %v941, %v935
    %v1404 = vpack.c.b16 %v942, %v936
    %v1405 = vpack.c.b16 %v943, %v937
    %v1406 = vpack.c.b16 %v944, %v938
    %v1407 = vpack.c.b16 %v945, %v939
    %v1408 = vpack.c.b16 %v946, %v940
    %v1409 = vpack.c.b16 %v953, %v947
    %v1410 = vpack.c.b16 %v954, %v948
    %v1411 = vpack.c.b16 %v955, %v949
    %v1412 = vpack.c.b16 %v956, %v950
    %v1413 = vpack.c.b16 %v957, %v951
    %v1414 = vpack.c.b16 %v958, %v952
    %v1415 = vpack.c.b16 %v965, %v959
    %v1416 = vpack.c.b16 %v966, %v960
    %v1417 = vpack.c.b16 %v967, %v961
    %v1418 = vpack.c.b16 %v968, %v962
    %v1419 = vpack.c.b16 %v969, %v963
    %v1420 = vpack.c.b16 %v970, %v964
    %v1421 = vpack.c.b16 %v977, %v971
    %v1422 = vpack.c.b16 %v978, %v972
    %v1423 = vpack.c.b16 %v979, %v973
    %v1424 = vpack.c.b16 %v980, %v974
    %v1425 = vpack.c.b16 %v981, %v975
    %v1426 = vpack.c.b16 %v982, %v976
    %v1427 = vpack.c.b16 %v989, %v983
    %v1428 = vpack.c.b16 %v990, %v984
    %v1429 = vpack.c.b16 %v991, %v985
    %v1430 = vpack.c.b16 %v992, %v986
    %v1431 = vpack.c.b16 %v993, %v987
    %v1432 = vpack.c.b16 %v994, %v988
    %v1433 = vpack.c.b16 %v1001, %v995
    %v1434 = vpack.c.b16 %v1002, %v996
    %v1435 = vpack.c.b16 %v1003, %v997
    %v1436 = vpack.c.b16 %v1004, %v998
    %v1437 = vpack.c.b16 %v1005, %v999
    %v1438 = vpack.c.b16 %v1006, %v1000
    %v1439 = vpack.c.b16 %v1013, %v1007
    %v1440 = vpack.c.b16 %v1014, %v1008
    %v1441 = vpack.c.b16 %v1015, %v1009
    %v1442 = vpack.c.b16 %v1016, %v1010
    %v1443 = vpack.c.b16 %v1017, %v1011
    %v1444 = vpack.c.b16 %v1018, %v1012
    %v1445 = vpack.c.b16 %v1025, %v1019
    %v1446 = vpack.c.b16 %v1026, %v1020
    %v1447 = vpack.c.b16 %v1027, %v1021
    %v1448 = vpack.c.b16 %v1028, %v1022
    %v1449 = vpack.c.b16 %v1029, %v1023
    %v1450 = vpack.c.b16 %v1030, %v1024
    %v1451 = vpack.c.b16 %v1037, %v1031
    %v1452 = vpack.c.b16 %v1038, %v1032
    %v1453 = vpack.c.b16 %v1039, %v1033
    %v1454 = vpack.c.b16 %v1040, %v1034
    %v1455 = vpack.c.b16 %v1041, %v1035
    %v1456 = vpack.c.b16 %v1042, %v1036
    %v1457 = vpack.c.b16 %v1049, %v1043
    %v1458 = vpack.c.b16 %v1050, %v1044
    %v1459 = vpack.c.b16 %v1051, %v1045
    %v1460 = vpack.c.b16 %v1052, %v1046
    %v1461 = vpack.c.b16 %v1053, %v1047
    %v1462 = vpack.c.b16 %v1054, %v1048
    %v1463 = vpack.c.b16 %v1061, %v1055
    %v1464 = vpack.c.b16 %v1062, %v1056
    %v1465 = vpack.c.b16 %v1063, %v1057
    %v1466 = vpack.c.b16 %v1064, %v1058
    %v1467 = vpack.c.b16 %v1065, %v1059
    %v1468 = vpack.c.b16 %v1066, %v1060
    %v1469 = vpack.c.b16 %v1073, %v1067
    %v1470 = vpack.c.b16 %v1074, %v1068
    %v1471 = vpack.c.b16 %v1075, %v1069
    %v1472 = vpack.c.b16 %v1076, %v1070
    %v1473 = vpack.c.b16 %v1077, %v1071
    %v1474 = vpack.c.b16 %v1078, %v1072
    %v1475 = vpack.c.b16 %v1085, %v1079
    %v1476 = vpack.c.b16 %v1086, %v1080
    %v1477 = vpack.c.b16 %v1087, %v1081
    %v1478 = vpack.c.b16 %v1088, %v1082
    %v1479 = vpack.c.b16 %v1089, %v1083
    %v1480 = vpack.c.b16 %v1090, %v1084
    %v1481 = vpack.c.b16 %v1097, %v1091
    %v1482 = vpack.c.b16 %v1098, %v1092
    %v1483 = vpack.c.b16 %v1099, %v1093
    %v1484 = vpack.c.b16 %v1100, %v1094
    %v1485 = vpack.c.b16 %v1101, %v1095
    %v1486 = vpack.c.b16 %v1102, %v1096
    %v1487 = vpack.c.b16 %v1109, %v1103
    %v1488 = vpack.c.b16 %v1110, %v1104
    %v1489 = vpack.c.b16 %v1111, %v1105
    %v1490 = vpack.c.b16 %v1112, %v1106
    %v1491 = vpack.c.b16 %v1113, %v1107
    %v1492 = vpack.c.b16 %v1114, %v1108
    %v1493 = vpack.c.b16 %v1121, %v1115
    %v1494 = vpack.c.b16 %v1122, %v1116
    %v1495 = vpack.c.b16 %v1123, %v1117
    %v1496 = vpack.c.b16 %v1124, %v1118
    %v1497 = vpack.c.b16 %v1125, %v1119
    %v1498 = vpack.c.b16 %v1126, %v1120
    %v1499 = vpack.c.b16 %v1133, %v1127
    %v1500 = vpack.c.b16 %v1134, %v1128
    %v1501 = vpack.c.b16 %v1135, %v1129
    %v1502 = vpack.c.b16 %v1136, %v1130
    %v1503 = vpack.c.b16 %v1137, %v1131
    %v1504 = vpack.c.b16 %v1138, %v1132
    %v1505 = vpack.c.b16 %v1145, %v1139
    %v1506 = vpack.c.b16 %v1146, %v1140
    %v1507 = vpack.c.b16 %v1147, %v1141
    %v1508 = vpack.c.b16 %v1148, %v1142
    %v1509 = vpack.c.b16 %v1149, %v1143
    %v1510 = vpack.c.b16 %v1150, %v1144
    %v1511 = vpack.c.b16 %v1157, %v1151
    %v1512 = vpack.c.b16 %v1158, %v1152
    %v1513 = vpack.c.b16 %v1159, %v1153
    %v1514 = vpack.c.b16 %v1160, %v1154
    %v1515 = vpack.c.b16 %v1161, %v1155
    %v1516 = vpack.c.b16 %v1162, %v1156
    %v1517 = vpack.c.b16 %v1169, %v1163
    %v1518 = vpack.c.b16 %v1170, %v1164
    %v1519 = vpack.c.b16 %v1171, %v1165
    %v1520 = vpack.c.b16 %v1172, %v1166
    %v1521 = vpack.c.b16 %v1173, %v1167
    %v1522 = vpack.c.b16 %v1174, %v1168
    %v1523 = vpack.c.b16 %v1181, %v1175
    %v1524 = vpack.c.b16 %v1182, %v1176
    %v1525 = vpack.c.b16 %v1183, %v1177
    %v1526 = vpack.c.b16 %v1184, %v1178
    %v1527 = vpack.c.b16 %v1185, %v1179
    %v1528 = vpack.c.b16 %v1186, %v1180
    %v1529 = vpack.c.b16 %v1193, %v1187
    %v1530 = vpack.c.b16 %v1194, %v1188
    %v1531 = vpack.c.b16 %v1195, %v1189
    %v1532 = vpack.c.b16 %v1196, %v1190
    %v1533 = vpack.c.b16 %v1197, %v1191
    %v1534 = vpack.c.b16 %v1198, %v1192
    %v1535 = vpack.c.b16 %v1205, %v1199
    %v1536 = vpack.c.b16 %v1206, %v1200
    %v1537 = vpack.c.b16 %v1207, %v1201
    %v1538 = vpack.c.b16 %v1208, %v1202
    %v1539 = vpack.c.b16 %v1209, %v1203
    %v1540 = vpack.c.b16 %v1210, %v1204
    %v1541 = vpack.c.b16 %v1217, %v1211
    %v1542 = vpack.c.b16 %v1218, %v1212
    %v1543 = vpack.c.b16 %v1219, %v1213
    %v1544 = vpack.c.b16 %v1220, %v1214
    %v1545 = vpack.c.b16 %v1221, %v1215
    %v1546 = vpack.c.b16 %v1222, %v1216
    %v1547 = vpack.c.b16 %v1229, %v1223
    %v1548 = vpack.c.b16 %v1230, %v1224
    %v1549 = vpack.c.b16 %v1231, %v1225
    %v1550 = vpack.c.b16 %v1232, %v1226
    %v1551 = vpack.c.b16 %v1233, %v1227
    %v1552 = vpack.c.b16 %v1234, %v1228
    %v1553 = vpack.c.b16 %v1241, %v1235
    %v1554 = vpack.c.b16 %v1242, %v1236
    %v1555 = vpack.c.b16 %v1243, %v1237
    %v1556 = vpack.c.b16 %v1244, %v1238
    %v1557 = vpack.c.b16 %v1245, %v1239
    %v1558 = vpack.c.b16 %v1246, %v1240
    %v1559 = vpack.c.b16 %v1253, %v1247
    %v1560 = vpack.c.b16 %v1254, %v1248
    %v1561 = vpack.c.b16 %v1255, %v1249
    %v1562 = vpack.c.b16 %v1256, %v1250
    %v1563 = vpack.c.b16 %v1257, %v1251
    %v1564 = vpack.c.b16 %v1258, %v1252
    %v1565 = vpack.c.b16 %v1265, %v1259
    %v1566 = vpack.c.b16 %v1266, %v1260
    %v1567 = vpack.c.b16 %v1267, %v1261
    %v1568 = vpack.c.b16 %v1268, %v1262
    %v1569 = vpack.c.b16 %v1269, %v1263
    %v1570 = vpack.c.b16 %v1270, %v1264
    %v1571 = vpack.c.b16 %v1277, %v1271
    %v1572 = vpack.c.b16 %v1278, %v1272
    %v1573 = vpack.c.b16 %v1279, %v1273
    %v1574 = vpack.c.b16 %v1280, %v1274
    %v1575 = vpack.c.b16 %v1281, %v1275
    %v1576 = vpack.c.b16 %v1282, %v1276
    %v1577 = vpack.c.b16 %v1289, %v1283
    %v1578 = vpack.c.b16 %v1290, %v1284
    %v1579 = vpack.c.b16 %v1291, %v1285
    %v1580 = vpack.c.b16 %v1292, %v1286
    %v1581 = vpack.c.b16 %v1293, %v1287
    %v1582 = vpack.c.b16 %v1294, %v1288
    %1871 = vmatprep.subr.bf16.mxu0 %v1296
    %1872 = vmatpush1.bf16.msra.mxu0 %v1295
    %1873 = vmatprep.subr.bf16.mxu0 %v1302
    %1874 = vmatpush1.bf16.msra.mxu0 %v1301
    %1875 = vmatprep.subr.bf16.mxu0 %v1308
    %1876 = vmatpush1.bf16.msra.mxu0 %v1307
    %1877 = vmatprep.subr.bf16.mxu0 %v1314
    %1878 = vmatpush1.bf16.msra.mxu0 %v1313
    %1879 = vmatprep.subr.bf16.mxu0 %v1320
    %1880 = vmatpush1.bf16.msra.mxu0 %v1319
    %1881 = vmatprep.subr.bf16.mxu0 %v1326
    %1882 = vmatpush1.bf16.msra.mxu0 %v1325
    %1883 = vmatprep.subr.bf16.mxu0 %v1332
    %1884 = vmatpush1.bf16.msra.mxu0 %v1331
    %1885 = vmatprep.subr.bf16.mxu0 %v1338
    %1886 = vmatpush1.bf16.msra.mxu0 %v1337
    %1887 = vmatprep.subr.bf16.mxu0 %v1344
    %1888 = vmatpush1.bf16.msra.mxu0 %v1343
    %1889 = vmatprep.subr.bf16.mxu0 %v1350
    %1890 = vmatpush1.bf16.msra.mxu0 %v1349
    %1891 = vmatprep.subr.bf16.mxu0 %v1356
    %1892 = vmatpush1.bf16.msra.mxu0 %v1355
    %1893 = vmatprep.subr.bf16.mxu0 %v1362
    %1894 = vmatpush1.bf16.msra.mxu0 %v1361
    %1895 = vmatprep.subr.bf16.mxu0 %v1368
    %1896 = vmatpush1.bf16.msra.mxu0 %v1367
    %1897 = vmatprep.subr.bf16.mxu0 %v1374
    %1898 = vmatpush1.bf16.msra.mxu0 %v1373
    %1899 = vmatprep.subr.bf16.mxu0 %v1380
    %1900 = vmatpush1.bf16.msra.mxu0 %v1379
    %1901 = vmatprep.subr.bf16.mxu0 %v1386
    %1902 = vmatpush1.bf16.msra.mxu0 %v1385
    %1903 = vmatprep.mubr.bf16.mxu0 %v106
    %1904 = vmatmul.mubr.bf16.gmra.mrb[0].mxu0 %v105
    %v1905 = vpop.f32.mrb[0].mxu0
    %v1906 = vadd.f32 %v404, %v1905
    %v1907 = vpop.f32.mrb[0].mxu0
    %v1908 = vadd.f32 %v408, %v1907
    %v1909 = vpop.f32.mrb[0].mxu0
    %v1910 = vpop.f32.mrb[0].mxu0
    %1911 = vdwg.mxu0
    %1912 = vmatprep.subr.bf16.mxu0 %v1392
    %1913 = vmatpush1.bf16.msra.mxu0 %v1391
    %1914 = vmatprep.subr.bf16.mxu0 %v1398
    %1915 = vmatpush1.bf16.msra.mxu0 %v1397
    %1916 = vmatprep.subr.bf16.mxu0 %v1404
    %1917 = vmatpush1.bf16.msra.mxu0 %v1403
    %1918 = vmatprep.subr.bf16.mxu0 %v1410
    %1919 = vmatpush1.bf16.msra.mxu0 %v1409
    %1920 = vmatprep.subr.bf16.mxu0 %v1416
    %1921 = vmatpush1.bf16.msra.mxu0 %v1415
    %1922 = vmatprep.subr.bf16.mxu0 %v1422
    %1923 = vmatpush1.bf16.msra.mxu0 %v1421
    %1924 = vmatprep.subr.bf16.mxu0 %v1428
    %1925 = vmatpush1.bf16.msra.mxu0 %v1427
    %1926 = vmatprep.subr.bf16.mxu0 %v1434
    %1927 = vmatpush1.bf16.msra.mxu0 %v1433
    %1928 = vmatprep.subr.bf16.mxu0 %v1440
    %1929 = vmatpush1.bf16.msra.mxu0 %v1439
    %1930 = vmatprep.subr.bf16.mxu0 %v1446
    %1931 = vmatpush1.bf16.msra.mxu0 %v1445
    %1932 = vmatprep.subr.bf16.mxu0 %v1452
    %1933 = vmatpush1.bf16.msra.mxu0 %v1451
    %1934 = vmatprep.subr.bf16.mxu0 %v1458
    %1935 = vmatpush1.bf16.msra.mxu0 %v1457
    %1936 = vmatprep.subr.bf16.mxu0 %v1464
    %1937 = vmatpush1.bf16.msra.mxu0 %v1463
    %1938 = vmatprep.subr.bf16.mxu0 %v1470
    %1939 = vmatpush1.bf16.msra.mxu0 %v1469
    %1940 = vmatprep.subr.bf16.mxu0 %v1476
    %1941 = vmatpush1.bf16.msra.mxu0 %v1475
    %1942 = vmatprep.subr.bf16.mxu0 %v1482
    %1943 = vmatpush1.bf16.msra.mxu0 %v1481
    %1944 = vmatprep.mubr.bf16.mxu0 %v108
    %1945 = vmatmul.mubr.bf16.gmra.mrb[0].mxu0 %v107
    %v1946 = vpop.f32.mrb[0].mxu0
    %v1947 = vadd.f32 %v1906, %v1946
    %v1948 = vpop.f32.mrb[0].mxu0
    %v1949 = vadd.f32 %v1908, %v1948
    %v1950 = vpop.f32.mrb[0].mxu0
    %v1951 = vpop.f32.mrb[0].mxu0
    %1952 = vdwg.mxu0
    %1953 = vmatprep.subr.bf16.mxu0 %v1488
    %1954 = vmatpush1.bf16.msra.mxu0 %v1487
    %1955 = vmatprep.subr.bf16.mxu0 %v1494
    %1956 = vmatpush1.bf16.msra.mxu0 %v1493
    %1957 = vmatprep.subr.bf16.mxu0 %v1500
    %1958 = vmatpush1.bf16.msra.mxu0 %v1499
    %1959 = vmatprep.subr.bf16.mxu0 %v1506
    %1960 = vmatpush1.bf16.msra.mxu0 %v1505
    %1961 = vmatprep.subr.bf16.mxu0 %v1512
    %1962 = vmatpush1.bf16.msra.mxu0 %v1511
    %1963 = vmatprep.subr.bf16.mxu0 %v1518
    %1964 = vmatpush1.bf16.msra.mxu0 %v1517
    %1965 = vmatprep.subr.bf16.mxu0 %v1524
    %1966 = vmatpush1.bf16.msra.mxu0 %v1523
    %1967 = vmatprep.subr.bf16.mxu0 %v1530
    %1968 = vmatpush1.bf16.msra.mxu0 %v1529
    %1969 = vmatprep.subr.bf16.mxu0 %v1536
    %1970 = vmatpush1.bf16.msra.mxu0 %v1535
    %1971 = vmatprep.subr.bf16.mxu0 %v1542
    %1972 = vmatpush1.bf16.msra.mxu0 %v1541
    %1973 = vmatprep.subr.bf16.mxu0 %v1548
    %1974 = vmatpush1.bf16.msra.mxu0 %v1547
    %1975 = vmatprep.subr.bf16.mxu0 %v1554
    %1976 = vmatpush1.bf16.msra.mxu0 %v1553
    %1977 = vmatprep.subr.bf16.mxu0 %v1560
    %1978 = vmatpush1.bf16.msra.mxu0 %v1559
    %1979 = vmatprep.subr.bf16.mxu0 %v1566
    %1980 = vmatpush1.bf16.msra.mxu0 %v1565
    %1981 = vmatprep.subr.bf16.mxu0 %v1572
    %1982 = vmatpush1.bf16.msra.mxu0 %v1571
    %1983 = vmatprep.subr.bf16.mxu0 %v1578
    %1984 = vmatpush1.bf16.msra.mxu0 %v1577
    %1985 = vmatprep.mubr.bf16.mxu0 %v110
    %1986 = vmatmul.mubr.bf16.gmra.mrb[0].mxu0 %v109
    %v1987 = vpop.f32.mrb[0].mxu0
    %v1988 = vadd.f32 %v1947, %v1987
    %v1989 = vpop.f32.mrb[0].mxu0
    %v1990 = vadd.f32 %v1949, %v1989
    %v1991 = vpop.f32.mrb[0].mxu0
    %v1992 = vpop.f32.mrb[0].mxu0
    %1993 = vdwg.mxu0
    %1994 = vmatprep.subr.bf16.mxu0 %v1298
    %1995 = vmatpush1.bf16.msra.mxu0 %v1297
    %1996 = vmatprep.subr.bf16.mxu0 %v1304
    %1997 = vmatpush1.bf16.msra.mxu0 %v1303
    %1998 = vmatprep.subr.bf16.mxu0 %v1310
    %1999 = vmatpush1.bf16.msra.mxu0 %v1309
    %2000 = vmatprep.subr.bf16.mxu0 %v1316
    %2001 = vmatpush1.bf16.msra.mxu0 %v1315
    %2002 = vmatprep.subr.bf16.mxu0 %v1322
    %2003 = vmatpush1.bf16.msra.mxu0 %v1321
    %2004 = vmatprep.subr.bf16.mxu0 %v1328
    %2005 = vmatpush1.bf16.msra.mxu0 %v1327
    %2006 = vmatprep.subr.bf16.mxu0 %v1334
    %2007 = vmatpush1.bf16.msra.mxu0 %v1333
    %2008 = vmatprep.subr.bf16.mxu0 %v1340
    %2009 = vmatpush1.bf16.msra.mxu0 %v1339
    %2010 = vmatprep.subr.bf16.mxu0 %v1346
    %2011 = vmatpush1.bf16.msra.mxu0 %v1345
    %2012 = vmatprep.subr.bf16.mxu0 %v1352
    %2013 = vmatpush1.bf16.msra.mxu0 %v1351
    %2014 = vmatprep.subr.bf16.mxu0 %v1358
    %2015 = vmatpush1.bf16.msra.mxu0 %v1357
    %2016 = vmatprep.subr.bf16.mxu0 %v1364
    %2017 = vmatpush1.bf16.msra.mxu0 %v1363
    %2018 = vmatprep.subr.bf16.mxu0 %v1370
    %2019 = vmatpush1.bf16.msra.mxu0 %v1369
    %2020 = vmatprep.subr.bf16.mxu0 %v1376
    %2021 = vmatpush1.bf16.msra.mxu0 %v1375
    %2022 = vmatprep.subr.bf16.mxu0 %v1382
    %2023 = vmatpush1.bf16.msra.mxu0 %v1381
    %2024 = vmatprep.subr.bf16.mxu0 %v1388
    %2025 = vmatpush1.bf16.msra.mxu0 %v1387
    %2026 = vmatprep.mubr.bf16.mxu0 %v106
    %2027 = vmatmul.mubr.bf16.gmra.mrb[0].mxu0 %v105
    %v2028 = vpop.f32.mrb[0].mxu0
    %v2029 = vadd.f32 %v412, %v2028
    %v2030 = vpop.f32.mrb[0].mxu0
    %v2031 = vadd.f32 %v416, %v2030
    %v2032 = vpop.f32.mrb[0].mxu0
    %v2033 = vpop.f32.mrb[0].mxu0
    %2034 = vdwg.mxu0
    %2035 = vmatprep.subr.bf16.mxu0 %v1394
    %2036 = vmatpush1.bf16.msra.mxu0 %v1393
    %2037 = vmatprep.subr.bf16.mxu0 %v1400
    %2038 = vmatpush1.bf16.msra.mxu0 %v1399
    %2039 = vmatprep.subr.bf16.mxu0 %v1406
    %2040 = vmatpush1.bf16.msra.mxu0 %v1405
    %2041 = vmatprep.subr.bf16.mxu0 %v1412
    %2042 = vmatpush1.bf16.msra.mxu0 %v1411
    %2043 = vmatprep.subr.bf16.mxu0 %v1418
    %2044 = vmatpush1.bf16.msra.mxu0 %v1417
    %2045 = vmatprep.subr.bf16.mxu0 %v1424
    %2046 = vmatpush1.bf16.msra.mxu0 %v1423
    %2047 = vmatprep.subr.bf16.mxu0 %v1430
    %2048 = vmatpush1.bf16.msra.mxu0 %v1429
    %2049 = vmatprep.subr.bf16.mxu0 %v1436
    %2050 = vmatpush1.bf16.msra.mxu0 %v1435
    %2051 = vmatprep.subr.bf16.mxu0 %v1442
    %2052 = vmatpush1.bf16.msra.mxu0 %v1441
    %2053 = vmatprep.subr.bf16.mxu0 %v1448
    %2054 = vmatpush1.bf16.msra.mxu0 %v1447
    %2055 = vmatprep.subr.bf16.mxu0 %v1454
    %2056 = vmatpush1.bf16.msra.mxu0 %v1453
    %2057 = vmatprep.subr.bf16.mxu0 %v1460
    %2058 = vmatpush1.bf16.msra.mxu0 %v1459
    %2059 = vmatprep.subr.bf16.mxu0 %v1466
    %2060 = vmatpush1.bf16.msra.mxu0 %v1465
    %2061 = vmatprep.subr.bf16.mxu0 %v1472
    %2062 = vmatpush1.bf16.msra.mxu0 %v1471
    %2063 = vmatprep.subr.bf16.mxu0 %v1478
    %2064 = vmatpush1.bf16.msra.mxu0 %v1477
    %2065 = vmatprep.subr.bf16.mxu0 %v1484
    %2066 = vmatpush1.bf16.msra.mxu0 %v1483
    %2067 = vmatprep.mubr.bf16.mxu0 %v108
    %2068 = vmatmul.mubr.bf16.gmra.mrb[0].mxu0 %v107
    %v2069 = vpop.f32.mrb[0].mxu0
    %v2070 = vadd.f32 %v2029, %v2069
    %v2071 = vpop.f32.mrb[0].mxu0
    %v2072 = vadd.f32 %v2031, %v2071
    %v2073 = vpop.f32.mrb[0].mxu0
    %v2074 = vpop.f32.mrb[0].mxu0
    %2075 = vdwg.mxu0
    %2076 = vmatprep.subr.bf16.mxu0 %v1490
    %2077 = vmatpush1.bf16.msra.mxu0 %v1489
    %2078 = vmatprep.subr.bf16.mxu0 %v1496
    %2079 = vmatpush1.bf16.msra.mxu0 %v1495
    %2080 = vmatprep.subr.bf16.mxu0 %v1502
    %2081 = vmatpush1.bf16.msra.mxu0 %v1501
    %2082 = vmatprep.subr.bf16.mxu0 %v1508
    %2083 = vmatpush1.bf16.msra.mxu0 %v1507
    %2084 = vmatprep.subr.bf16.mxu0 %v1514
    %2085 = vmatpush1.bf16.msra.mxu0 %v1513
    %2086 = vmatprep.subr.bf16.mxu0 %v1520
    %2087 = vmatpush1.bf16.msra.mxu0 %v1519
    %2088 = vmatprep.subr.bf16.mxu0 %v1526
    %2089 = vmatpush1.bf16.msra.mxu0 %v1525
    %2090 = vmatprep.subr.bf16.mxu0 %v1532
    %2091 = vmatpush1.bf16.msra.mxu0 %v1531
    %2092 = vmatprep.subr.bf16.mxu0 %v1538
    %2093 = vmatpush1.bf16.msra.mxu0 %v1537
    %2094 = vmatprep.subr.bf16.mxu0 %v1544
    %2095 = vmatpush1.bf16.msra.mxu0 %v1543
    %2096 = vmatprep.subr.bf16.mxu0 %v1550
    %2097 = vmatpush1.bf16.msra.mxu0 %v1549
    %2098 = vmatprep.subr.bf16.mxu0 %v1556
    %2099 = vmatpush1.bf16.msra.mxu0 %v1555
    %2100 = vmatprep.subr.bf16.mxu0 %v1562
    %2101 = vmatpush1.bf16.msra.mxu0 %v1561
    %2102 = vmatprep.subr.bf16.mxu0 %v1568
    %2103 = vmatpush1.bf16.msra.mxu0 %v1567
    %2104 = vmatprep.subr.bf16.mxu0 %v1574
    %2105 = vmatpush1.bf16.msra.mxu0 %v1573
    %2106 = vmatprep.subr.bf16.mxu0 %v1580
    %2107 = vmatpush1.bf16.msra.mxu0 %v1579
    %2108 = vmatprep.mubr.bf16.mxu0 %v110
    %2109 = vmatmul.mubr.bf16.gmra.mrb[0].mxu0 %v109
    %v2110 = vpop.f32.mrb[0].mxu0
    %v2111 = vadd.f32 %v2070, %v2110
    %v2112 = vpop.f32.mrb[0].mxu0
    %v2113 = vadd.f32 %v2072, %v2112
    %v2114 = vpop.f32.mrb[0].mxu0
    %v2115 = vpop.f32.mrb[0].mxu0
    %2116 = vdwg.mxu0
    %2117 = vmatprep.subr.bf16.mxu0 %v1300
    %2118 = vmatpush1.bf16.msra.mxu0 %v1299
    %2119 = vmatprep.subr.bf16.mxu0 %v1306
    %2120 = vmatpush1.bf16.msra.mxu0 %v1305
    %2121 = vmatprep.subr.bf16.mxu0 %v1312
    %2122 = vmatpush1.bf16.msra.mxu0 %v1311
    %2123 = vmatprep.subr.bf16.mxu0 %v1318
    %2124 = vmatpush1.bf16.msra.mxu0 %v1317
    %2125 = vmatprep.subr.bf16.mxu0 %v1324
    %2126 = vmatpush1.bf16.msra.mxu0 %v1323
    %2127 = vmatprep.subr.bf16.mxu0 %v1330
    %2128 = vmatpush1.bf16.msra.mxu0 %v1329
    %2129 = vmatprep.subr.bf16.mxu0 %v1336
    %2130 = vmatpush1.bf16.msra.mxu0 %v1335
    %2131 = vmatprep.subr.bf16.mxu0 %v1342
    %2132 = vmatpush1.bf16.msra.mxu0 %v1341
    %2133 = vmatprep.subr.bf16.mxu0 %v1348
    %2134 = vmatpush1.bf16.msra.mxu0 %v1347
    %2135 = vmatprep.subr.bf16.mxu0 %v1354
    %2136 = vmatpush1.bf16.msra.mxu0 %v1353
    %2137 = vmatprep.subr.bf16.mxu0 %v1360
    %2138 = vmatpush1.bf16.msra.mxu0 %v1359
    %2139 = vmatprep.subr.bf16.mxu0 %v1366
    %2140 = vmatpush1.bf16.msra.mxu0 %v1365
    %2141 = vmatprep.subr.bf16.mxu0 %v1372
    %2142 = vmatpush1.bf16.msra.mxu0 %v1371
    %2143 = vmatprep.subr.bf16.mxu0 %v1378
    %2144 = vmatpush1.bf16.msra.mxu0 %v1377
    %2145 = vmatprep.subr.bf16.mxu0 %v1384
    %2146 = vmatpush1.bf16.msra.mxu0 %v1383
    %2147 = vmatprep.subr.bf16.mxu0 %v1390
    %2148 = vmatpush1.bf16.msra.mxu0 %v1389
    %2149 = vmatprep.mubr.bf16.mxu0 %v106
    %2150 = vmatmul.mubr.bf16.gmra.mrb[0].mxu0 %v105
    %v2151 = vpop.f32.mrb[0].mxu0
    %v2152 = vadd.f32 %v420, %v2151
    %v2153 = vpop.f32.mrb[0].mxu0
    %v2154 = vadd.f32 %v424, %v2153
    %v2155 = vpop.f32.mrb[0].mxu0
    %v2156 = vpop.f32.mrb[0].mxu0
    %2157 = vdwg.mxu0
    %2158 = vmatprep.subr.bf16.mxu0 %v1396
    %2159 = vmatpush1.bf16.msra.mxu0 %v1395
    %2160 = vmatprep.subr.bf16.mxu0 %v1402
    %2161 = vmatpush1.bf16.msra.mxu0 %v1401
    %2162 = vmatprep.subr.bf16.mxu0 %v1408
    %2163 = vmatpush1.bf16.msra.mxu0 %v1407
    %2164 = vmatprep.subr.bf16.mxu0 %v1414
    %2165 = vmatpush1.bf16.msra.mxu0 %v1413
    %2166 = vmatprep.subr.bf16.mxu0 %v1420
    %2167 = vmatpush1.bf16.msra.mxu0 %v1419
    %2168 = vmatprep.subr.bf16.mxu0 %v1426
    %2169 = vmatpush1.bf16.msra.mxu0 %v1425
    %2170 = vmatprep.subr.bf16.mxu0 %v1432
    %2171 = vmatpush1.bf16.msra.mxu0 %v1431
    %2172 = vmatprep.subr.bf16.mxu0 %v1438
    %2173 = vmatpush1.bf16.msra.mxu0 %v1437
    %2174 = vmatprep.subr.bf16.mxu0 %v1444
    %2175 = vmatpush1.bf16.msra.mxu0 %v1443
    %2176 = vmatprep.subr.bf16.mxu0 %v1450
    %2177 = vmatpush1.bf16.msra.mxu0 %v1449
    %2178 = vmatprep.subr.bf16.mxu0 %v1456
    %2179 = vmatpush1.bf16.msra.mxu0 %v1455
    %2180 = vmatprep.subr.bf16.mxu0 %v1462
    %2181 = vmatpush1.bf16.msra.mxu0 %v1461
    %2182 = vmatprep.subr.bf16.mxu0 %v1468
    %2183 = vmatpush1.bf16.msra.mxu0 %v1467
    %2184 = vmatprep.subr.bf16.mxu0 %v1474
    %2185 = vmatpush1.bf16.msra.mxu0 %v1473
    %2186 = vmatprep.subr.bf16.mxu0 %v1480
    %2187 = vmatpush1.bf16.msra.mxu0 %v1479
    %2188 = vmatprep.subr.bf16.mxu0 %v1486
    %2189 = vmatpush1.bf16.msra.mxu0 %v1485
    %2190 = vmatprep.mubr.bf16.mxu0 %v108
    %2191 = vmatmul.mubr.bf16.gmra.mrb[0].mxu0 %v107
    %v2192 = vpop.f32.mrb[0].mxu0
    %v2193 = vadd.f32 %v2152, %v2192
    %v2194 = vpop.f32.mrb[0].mxu0
    %v2195 = vadd.f32 %v2154, %v2194
    %v2196 = vpop.f32.mrb[0].mxu0
    %v2197 = vpop.f32.mrb[0].mxu0
    %2198 = vdwg.mxu0
    %2199 = vmatprep.subr.bf16.mxu0 %v1492
    %2200 = vmatpush1.bf16.msra.mxu0 %v1491
    %2201 = vmatprep.subr.bf16.mxu0 %v1498
    %2202 = vmatpush1.bf16.msra.mxu0 %v1497
    %2203 = vmatprep.subr.bf16.mxu0 %v1504
    %2204 = vmatpush1.bf16.msra.mxu0 %v1503
    %2205 = vmatprep.subr.bf16.mxu0 %v1510
    %2206 = vmatpush1.bf16.msra.mxu0 %v1509
    %2207 = vmatprep.subr.bf16.mxu0 %v1516
    %2208 = vmatpush1.bf16.msra.mxu0 %v1515
    %2209 = vmatprep.subr.bf16.mxu0 %v1522
    %2210 = vmatpush1.bf16.msra.mxu0 %v1521
    %2211 = vmatprep.subr.bf16.mxu0 %v1528
    %2212 = vmatpush1.bf16.msra.mxu0 %v1527
    %2213 = vmatprep.subr.bf16.mxu0 %v1534
    %2214 = vmatpush1.bf16.msra.mxu0 %v1533
    %2215 = vmatprep.subr.bf16.mxu0 %v1540
    %2216 = vmatpush1.bf16.msra.mxu0 %v1539
    %2217 = vmatprep.subr.bf16.mxu0 %v1546
    %2218 = vmatpush1.bf16.msra.mxu0 %v1545
    %2219 = vmatprep.subr.bf16.mxu0 %v1552
    %2220 = vmatpush1.bf16.msra.mxu0 %v1551
    %2221 = vmatprep.subr.bf16.mxu0 %v1558
    %2222 = vmatpush1.bf16.msra.mxu0 %v1557
    %2223 = vmatprep.subr.bf16.mxu0 %v1564
    %2224 = vmatpush1.bf16.msra.mxu0 %v1563
    %2225 = vmatprep.subr.bf16.mxu0 %v1570
    %2226 = vmatpush1.bf16.msra.mxu0 %v1569
    %2227 = vmatprep.subr.bf16.mxu0 %v1576
    %2228 = vmatpush1.bf16.msra.mxu0 %v1575
    %2229 = vmatprep.subr.bf16.mxu0 %v1582
    %2230 = vmatpush1.bf16.msra.mxu0 %v1581
    %2231 = vmatprep.mubr.bf16.mxu0 %v110
    %2232 = vmatmul.mubr.bf16.gmra.mrb[0].mxu0 %v109
    %v2233 = vpop.f32.mrb[0].mxu0
    %v2234 = vadd.f32 %v2193, %v2233
    %v2235 = vpop.f32.mrb[0].mxu0
    %v2236 = vadd.f32 %v2195, %v2235
    %v2237 = vpop.f32.mrb[0].mxu0
    %v2238 = vpop.f32.mrb[0].mxu0
    %2239 = vdwg.mxu0
    %v2240 = vtanh.pop %v1988
    %v2241 = vtanh.pop %v1990
    %v2242 = vtanh.pop %v2111
    %v2243 = vtanh.pop %v2113
    %v2244 = vtanh.pop %v2234
    %v2245 = vtanh.pop %v2236
    %v2246 = vld [vmem:[#allocation8] sm:$0x3f]
    %v2248 = vlaneseq
    %v2249 = vshrl.u32 %v2248, 7
    %v2250 = vsub.s32 0, %v2249
    %v2251 = vrot.slane %v2246, %v2250
    %v2252 = vlaneseq
    %v2253 = vshrl.u32 %v2252, 7
    %v2254 = vsub.s32 1, %v2253
    %v2255 = vrot.slane %v2246, %v2254
    %v2256 = vlaneseq
    %v2257 = vshrl.u32 %v2256, 7
    %v2258 = vsub.s32 2, %v2257
    %v2259 = vrot.slane %v2246, %v2258
    %v2260 = vlaneseq
    %v2261 = vshrl.u32 %v2260, 7
    %v2262 = vsub.s32 3, %v2261
    %v2263 = vrot.slane %v2246, %v2262
    %v2264 = vlaneseq
    %v2265 = vshrl.u32 %v2264, 7
    %v2266 = vsub.s32 4, %v2265
    %v2267 = vrot.slane %v2246, %v2266
    %v2268 = vlaneseq
    %v2269 = vshrl.u32 %v2268, 7
    %v2270 = vsub.s32 5, %v2269
    %v2271 = vrot.slane %v2246, %v2270
    %v2278 = vmul.f32 %v2240, %v2251
    %v2279 = vmul.f32 %v2241, %v2255
    %v2280 = vmul.f32 %v2242, %v2259
    %v2281 = vmul.f32 %v2243, %v2263
    %v2282 = vmul.f32 %v2244, %v2267
    %v2283 = vmul.f32 %v2245, %v2271
    %vm2284 = vcmask 1041408
    %v2285 = vsel %vm2284, %v2278, 0.0
    %v2286 = vsel %vm2284, %v2279, 0.0
    %v2287 = vadd.f32 %v2285, %v2286
    %v2288 = vsel %vm2284, %v2280, 0.0
    %v2289 = vadd.f32 %v2287, %v2288
    %v2290 = vsel %vm2284, %v2281, 0.0
    %v2291 = vadd.f32 %v2289, %v2290
    %v2292 = vsel %vm2284, %v2282, 0.0
    %v2293 = vadd.f32 %v2291, %v2292
    %v2294 = vsel %vm2284, %v2283, 0.0
    %v2295 = vadd.f32 %v2293, %v2294
    %2296 = vadd.xlane.f32.xlu0 %v2295
    %v2297 = vpop.xlane.xlu0 %2296
    %s2298 = sld [smem:[#allocation2]]
    %v2299 = vstv %s2298
    %v2300 = vadd.f32 %v2297, %v2299
    %vm2301 = vcmask 1024
    %2302 = vst.msk [vmem:[%s5] sm:$0x3] %vm2301, %v2300
    // Predicated region
    $region38: #{tpu_custom_call.1} parent=1 // pred_check
      _
    $region39: #{tpu_custom_call.1} parent=1 // pred_check_branch
      %2304 = sbr.rel (0) target = $region41
    $region40: #{tpu_custom_call.1} parent=1 // pred_region
      _
    $region41: #{tpu_custom_call.1} parent=1 // pred_fallthru
      _
    // Predicated region
    $region42: #{tpu_custom_call.1} parent=1 // pred_check
      _
    $region43: #{tpu_custom_call.1} parent=1 // pred_check_branch
      %2306 = sbr.rel (0) target = $region45
    $region44: #{tpu_custom_call.1} parent=1 // pred_region
      _
    $region45: #{tpu_custom_call.1} parent=1 // pred_fallthru
      _
    %2307 = vsyncpa [#allocation4], 1
    %2308 = vsyncpa [#allocation6], 1
    %2309 = vsyncpa [#allocation9], 1

</llo_original>
